<compile_context>
chip_gen: v7x
topology: tpu7x:2x2x1
jax: 0.10.0
libtpu: 0.0.40
codegen_flags: <defaults>
</compile_context>

<pallas_src>
import functools

import jax
import jax.numpy as jnp
from jax.experimental import pallas as pl
from jax.experimental.pallas import tpu as pltpu


# -----------------------------------------------------------------------------
# Fused kernel: chain of matmul + bias + optional ReLU, everything VMEM-resident.
# refs = [x, w0, b0, w1, b1, ..., wL-1, bL-1, out]
# -----------------------------------------------------------------------------
def _fused_chain_kernel(*refs, relu_flags):
    x_ref = refs[0]
    o_ref = refs[-1]
    wb_refs = refs[1:-1]

    a = x_ref[...]                                     # (M, K0) fp32
    for li, relu in enumerate(relu_flags):
        w = wb_refs[2 * li][...]                       # (K, N)
        b = wb_refs[2 * li + 1][...]                   # (1, N)
        a = jnp.dot(a, w, preferred_element_type=jnp.float32) + b
        if relu:
            a = jnp.maximum(a, 0.0)
    o_ref[...] = a.astype(o_ref.dtype)


def encoder_forward(x, dense_ws, dense_bs, relu_flags):
    """Run the whole encoder in one Pallas kernel.

    x         : (N, Cin, H, W) fp32 (NCHW, like PyTorch)
    dense_ws  : list of (K_l, N_l) fp32 matrices (convs already folded to dense)
    dense_bs  : list of (N_l,) fp32 biases (conv biases already spatially expanded)
    relu_flags: static tuple of bools, one per layer
    """
    n = x.shape[0]
    x2d = x.reshape(n, -1).astype(jnp.float32)         # NCHW flatten == torch view(N,-1)
    out_dim = dense_ws[-1].shape[1]

    flat_inputs = [x2d]
    flops = 0
    bytes_accessed = x2d.size * 4
    for w, b in zip(dense_ws, dense_bs):
        flat_inputs.append(w.astype(jnp.float32))
        flat_inputs.append(b.reshape(1, -1).astype(jnp.float32))
        flops += 2 * n * w.shape[0] * w.shape[1]
        bytes_accessed += (w.size + b.size) * 4
    bytes_accessed += n * out_dim * 4

    kernel = functools.partial(_fused_chain_kernel, relu_flags=relu_flags)
    vmem_spec = lambda: pl.BlockSpec(memory_space=pltpu.MemorySpace.VMEM)

    return pl.pallas_call(
        kernel,
        out_shape=jax.ShapeDtypeStruct((n, out_dim), jnp.float32),
        in_specs=[vmem_spec() for _ in flat_inputs],
        out_specs=vmem_spec(),
        cost_estimate=pl.CostEstimate(
            flops=int(flops), transcendentals=0, bytes_accessed=int(bytes_accessed)
        ),
    )(*flat_inputs)


# -----------------------------------------------------------------------------
# Weight preprocessing (weight-only, done ONCE outside the hot path):
# fold each Conv2d into a dense matrix with NCHW flatten order on both sides.
# -----------------------------------------------------------------------------
def conv_to_dense(w, b, in_chw, stride, pad):
    """PyTorch Conv2d weight (Cout,Cin,KH,KW) -> dense T (Cin*H*W, Cout*Ho*Wo)
    such that x.reshape(N,-1) @ T + b_e == conv(x).reshape(N,-1) (NCHW flatten)."""
    cin_x, H, W = in_chw
    Cout, Cin, KH, KW = w.shape
    assert Cin == cin_x
    Ho = (H + 2 * pad - KH) // stride + 1
    Wo = (W + 2 * pad - KW) // stride + 1

    # One-hot selectors; out-of-range (padded) taps never match -> zero rows.
    hi_t = jnp.arange(Ho)[:, None] * stride + jnp.arange(KH)[None, :] - pad   # (Ho, KH)
    wi_t = jnp.arange(Wo)[:, None] * stride + jnp.arange(KW)[None, :] - pad   # (Wo, KW)
    row_sel = (jnp.arange(H)[:, None, None] == hi_t[None]).astype(w.dtype)    # (H, Ho, KH)
    col_sel = (jnp.arange(W)[:, None, None] == wi_t[None]).astype(w.dtype)    # (W, Wo, KW)

    # T[cin, hi, wi, cout, ho, wo] = sum_{ki,kj} w[cout,cin,ki,kj] R[hi,ho,ki] C[wi,wo,kj]
    t = jnp.einsum("oikl,hpk,wql->ihwopq", w, row_sel, col_sel)
    t = t.reshape(Cin * H * W, Cout * Ho * Wo)

    b_e = jnp.repeat(b, Ho * Wo)                                              # (c,h,w) order
    return t, b_e, (Cout, Ho, Wo)


def prepare_dense_layers(params, in_chw):
    ws, bs, flags = [], [], []
    chw = in_chw
    for (w, b, stride, pad, relu) in params["conv"]:
        t, b_e, chw = conv_to_dense(w, b, chw, stride, pad)
        ws.append(t)
        bs.append(b_e)
        flags.append(bool(relu))
    for (w, b, relu) in params["fc"]:
        ws.append(w.T)                                  # torch Linear: x @ W.T + b
        bs.append(b)
        flags.append(bool(relu))
    return ws, bs, tuple(flags)


# -----------------------------------------------------------------------------
# Pure-JAX reference (correctness sanity check)
# -----------------------------------------------------------------------------
def encoder_reference(x, params):
    enc = x
    for (w, b, stride, pad, relu) in params["conv"]:
        enc = jax.lax.conv_general_dilated(
            enc, w, window_strides=(stride, stride),
            padding=[(pad, pad), (pad, pad)],
            dimension_numbers=("NCHW", "OIHW", "NCHW"),
        ) + b.reshape(1, -1, 1, 1)
        if relu:
            enc = jnp.maximum(enc, 0.0)
    enc = enc.reshape(enc.shape[0], -1)
    for (w, b, relu) in params["fc"]:
        enc = enc @ w.T + b
        if relu:
            enc = jnp.maximum(enc, 0.0)
    return enc


def init_params(key):
    ks = jax.random.split(key, 8)
    scale = 0.1
    conv = [
        (scale * jax.random.normal(ks[0], (8, 4, 3, 3), jnp.float32),
         scale * jax.random.normal(ks[1], (8,), jnp.float32), 2, 1, True),
        (scale * jax.random.normal(ks[2], (16, 8, 3, 3), jnp.float32),
         scale * jax.random.normal(ks[3], (16,), jnp.float32), 2, 1, True),
    ]
    fc = [
        (scale * jax.random.normal(ks[4], (32, 16 * 4 * 4), jnp.float32),
         scale * jax.random.normal(ks[5], (32,), jnp.float32), True),
        (scale * jax.random.normal(ks[6], (8, 32), jnp.float32),
         scale * jax.random.normal(ks[7], (8,), jnp.float32), False),
    ]
    return {"conv": conv, "fc": fc}


if __name__ == "__main__":
    key = jax.random.PRNGKey(0)
    k_x, k_p = jax.random.split(key)
    x = jax.random.normal(k_x, (2, 4, 16, 16), jnp.float32)   # NCHW input
    params = init_params(k_p)

    # One-time weight folding (convs -> dense Toeplitz, fc -> (in,out) matrices).
    ws, bs, relu_flags = prepare_dense_layers(params, in_chw=(4, 16, 16))

    fwd = jax.jit(encoder_forward, static_argnames=("relu_flags",))
    out = jax.block_until_ready(fwd(x, ws, bs, relu_flags=relu_flags))

    ref = jax.block_until_ready(encoder_reference(x, params))
    assert out.shape == (2, 8), out.shape
    assert jnp.allclose(out, ref, atol=1e-4, rtol=1e-4), "mismatch vs reference"
    print("KERNEL_OK")
</pallas_src>

<mosaic_0001>
module attributes {stable_mosaic.version = 11 : i64} {
  func.func @_fused_chain_kernel(%arg0: memref<2x1024xf32, #tpu.memory_space<vmem>>, %arg1: memref<1024x512xf32, #tpu.memory_space<vmem>>, %arg2: memref<1x512xf32, #tpu.memory_space<vmem>>, %arg3: memref<512x256xf32, #tpu.memory_space<vmem>>, %arg4: memref<1x256xf32, #tpu.memory_space<vmem>>, %arg5: memref<256x32xf32, #tpu.memory_space<vmem>>, %arg6: memref<1x32xf32, #tpu.memory_space<vmem>>, %arg7: memref<32x8xf32, #tpu.memory_space<vmem>>, %arg8: memref<1x8xf32, #tpu.memory_space<vmem>>, %arg9: memref<2x8xf32, #tpu.memory_space<vmem>>) attributes {dimension_semantics = [], scalar_prefetch = 0 : i64, scratch_operands = 0 : i64, tpu.core_type = #tpu.core_type<tc>} {
    %c0 = arith.constant 0 : index
    %c0_0 = arith.constant 0 : index
    %0 = vector.load %arg0[%c0, %c0_0] : memref<2x1024xf32, #tpu.memory_space<vmem>>, vector<2x1024xf32>
    %c0_1 = arith.constant 0 : index
    %c0_2 = arith.constant 0 : index
    %1 = vector.load %arg1[%c0_1, %c0_2] : memref<1024x512xf32, #tpu.memory_space<vmem>>, vector<1024x512xf32>
    %c0_3 = arith.constant 0 : index
    %c0_4 = arith.constant 0 : index
    %2 = vector.load %arg2[%c0_3, %c0_4] : memref<1x512xf32, #tpu.memory_space<vmem>>, vector<1x512xf32>
    %cst = arith.constant dense<0.000000e+00> : vector<2x512xf32>
    %3 = tpu.matmul %0, %1, %cst {dimension_numbers = #tpu.dot_dimension_numbers<[1], [0], [0], [1], [0, 0, 1, 1], [], []>} : vector<2x1024xf32>, vector<1024x512xf32>, vector<2x512xf32> -> vector<2x512xf32>
    %4 = vector.broadcast %2 : vector<1x512xf32> to vector<2x512xf32>
    %5 = arith.addf %3, %4 : vector<2x512xf32>
    %cst_5 = arith.constant 0.000000e+00 : f32
    %6 = vector.broadcast %cst_5 : f32 to vector<2x512xf32>
    %7 = arith.maximumf %5, %6 : vector<2x512xf32>
    %c0_6 = arith.constant 0 : index
    %c0_7 = arith.constant 0 : index
    %8 = vector.load %arg3[%c0_6, %c0_7] : memref<512x256xf32, #tpu.memory_space<vmem>>, vector<512x256xf32>
    %c0_8 = arith.constant 0 : index
    %c0_9 = arith.constant 0 : index
    %9 = vector.load %arg4[%c0_8, %c0_9] : memref<1x256xf32, #tpu.memory_space<vmem>>, vector<1x256xf32>
    %cst_10 = arith.constant dense<0.000000e+00> : vector<2x256xf32>
    %10 = tpu.matmul %7, %8, %cst_10 {dimension_numbers = #tpu.dot_dimension_numbers<[1], [0], [0], [1], [0, 0, 1, 1], [], []>} : vector<2x512xf32>, vector<512x256xf32>, vector<2x256xf32> -> vector<2x256xf32>
    %11 = vector.broadcast %9 : vector<1x256xf32> to vector<2x256xf32>
    %12 = arith.addf %10, %11 : vector<2x256xf32>
    %cst_11 = arith.constant 0.000000e+00 : f32
    %13 = vector.broadcast %cst_11 : f32 to vector<2x256xf32>
    %14 = arith.maximumf %12, %13 : vector<2x256xf32>
    %c0_12 = arith.constant 0 : index
    %c0_13 = arith.constant 0 : index
    %15 = vector.load %arg5[%c0_12, %c0_13] : memref<256x32xf32, #tpu.memory_space<vmem>>, vector<256x32xf32>
    %c0_14 = arith.constant 0 : index
    %c0_15 = arith.constant 0 : index
    %16 = vector.load %arg6[%c0_14, %c0_15] : memref<1x32xf32, #tpu.memory_space<vmem>>, vector<1x32xf32>
    %cst_16 = arith.constant dense<0.000000e+00> : vector<2x32xf32>
    %17 = tpu.matmul %14, %15, %cst_16 {dimension_numbers = #tpu.dot_dimension_numbers<[1], [0], [0], [1], [0, 0, 1, 1], [], []>} : vector<2x256xf32>, vector<256x32xf32>, vector<2x32xf32> -> vector<2x32xf32>
    %18 = vector.broadcast %16 : vector<1x32xf32> to vector<2x32xf32>
    %19 = arith.addf %17, %18 : vector<2x32xf32>
    %cst_17 = arith.constant 0.000000e+00 : f32
    %20 = vector.broadcast %cst_17 : f32 to vector<2x32xf32>
    %21 = arith.maximumf %19, %20 : vector<2x32xf32>
    %c0_18 = arith.constant 0 : index
    %c0_19 = arith.constant 0 : index
    %22 = vector.load %arg7[%c0_18, %c0_19] : memref<32x8xf32, #tpu.memory_space<vmem>>, vector<32x8xf32>
    %c0_20 = arith.constant 0 : index
    %c0_21 = arith.constant 0 : index
    %23 = vector.load %arg8[%c0_20, %c0_21] : memref<1x8xf32, #tpu.memory_space<vmem>>, vector<1x8xf32>
    %cst_22 = arith.constant dense<0.000000e+00> : vector<2x8xf32>
    %24 = tpu.matmul %21, %22, %cst_22 {dimension_numbers = #tpu.dot_dimension_numbers<[1], [0], [0], [1], [0, 0, 1, 1], [], []>} : vector<2x32xf32>, vector<32x8xf32>, vector<2x8xf32> -> vector<2x8xf32>
    %25 = vector.broadcast %23 : vector<1x8xf32> to vector<2x8xf32>
    %26 = arith.addf %24, %25 : vector<2x8xf32>
    %c0_23 = arith.constant 0 : index
    %c0_24 = arith.constant 0 : index
    %27 = vector.load %arg9[%c0_23, %c0_24] : memref<2x8xf32, #tpu.memory_space<vmem>>, vector<2x8xf32>
    tpu.vector_store %arg9[%c0_23, %c0_24], %26 {strides = array<i32>} : memref<2x8xf32, #tpu.memory_space<vmem>>, vector<2x8xf32>,
    return
  }
}

</mosaic_0001>

<llo_original>
// kernel: encoder_forward.1
$region0: #{encoder_forward.1}
  #allocation0 [shape = 'u32[]', space=smem, size = 0x4, offset = 0x4, fixed_abs, tag = 'smem constant byte address 0x4 - core index']
  #allocation1 [shape = 'u32[144,128]{1,0:T(1,128)}', space=vmem, size = 0x12000, scoped, tag = 'internal scratch']
  %s0 = inlined_call_operand.vmem [shape: f32[2,1024], index: 0, kind: input, shape index: {}]
  %s1 = inlined_call_operand.hbm [shape: f32[1024,512], index: 1, kind: input, shape index: {}]
  %s2 = inlined_call_operand.hbm [shape: f32[1,512], index: 2, kind: input, shape index: {}]
  %s3 = inlined_call_operand.hbm [shape: f32[512,256], index: 3, kind: input, shape index: {}]
  %s4 = inlined_call_operand.hbm [shape: f32[1,256], index: 4, kind: input, shape index: {}]
  %s5 = inlined_call_operand.vmem [shape: f32[256,32], index: 5, kind: input, shape index: {}]
  %s6 = inlined_call_operand.hbm [shape: f32[1,32], index: 6, kind: input, shape index: {}]
  %s7 = inlined_call_operand.vmem [shape: f32[32,8], index: 7, kind: input, shape index: {}]
  %s8 = inlined_call_operand.hbm [shape: f32[1,8], index: 8, kind: input, shape index: {}]
  %s9 = inlined_call_operand.hbm [shape: f32[2,8], index: 9, kind: output, shape index: {}]
  %s10 = sld [smem:[#allocation0]]
  $region70: #{encoder_forward.1} parent=0
    _
  %s12 = ssub.s32 1, %s10
  %s13 = scalar_select 0, %s12, %s10
  $region1: #{encoder_forward.1} parent=0
    #allocation2 [shape = 'u8[2097152]{0}', space=vmem, size = 0x200000, scoped, tag = 'input window, operand 1, single buffered']
    #allocation3 [shape = 's32[1]{0}', space=sflag, size = 0x4, scoped, tag = 'scoped memory for encoder_forward.1']
    #allocation4 [shape = 's32[1]{0}', space=sflag, size = 0x4, scoped, tag = 'scoped memory for encoder_forward.1']
    #allocation5 [shape = 'u8[2048]{0}', space=vmem, size = 0x800, scoped, tag = 'input window, operand 2, single buffered']
    #allocation6 [shape = 's32[1]{0}', space=sflag, size = 0x4, scoped, tag = 'scoped memory for encoder_forward.1']
    #allocation7 [shape = 'u8[524288]{0}', space=vmem, size = 0x80000, scoped, tag = 'input window, operand 3, single buffered']
    #allocation8 [shape = 'u8[1024]{0}', space=vmem, size = 0x400, scoped, tag = 'input window, operand 4, single buffered']
    #allocation9 [shape = 's32[1]{0}', space=sflag, size = 0x4, scoped, tag = 'scoped memory for encoder_forward.1']
    #allocation10 [shape = 'u8[512]{0}', space=vmem, size = 0x400, scoped, tag = 'input window, operand 6, single buffered']
    #allocation11 [shape = 'u8[512]{0}', space=vmem, size = 0x400, scoped, tag = 'input window, operand 8, single buffered']
    #allocation12 [shape = 's32[1]{0}', space=sflag, size = 0x4, scoped, tag = 'scoped memory for encoder_forward.1']
    #allocation13 [shape = 'u8[1024]{0}', space=vmem, size = 0x400, scoped, tag = 'output window, operand 0, single buffered']
    %14 = vsyncpa [#allocation3], 0
    %15 = vsyncpa [#allocation6], 0
    %16 = vsyncpa [#allocation9], 0
    %17 = vsyncpa [#allocation12], 0
    %18 = vsyncpa [#allocation4], 0
    // Predicated region
    $region2: #{encoder_forward.1} parent=1 // pred_check
      _
    $region3: #{encoder_forward.1} parent=1 // pred_check_branch
      %20 = sbr.rel (0) target = $region5
    $region4: #{encoder_forward.1} parent=1 // pred_region
      _
    $region5: #{encoder_forward.1} parent=1 // pred_fallthru
      _
    // Predicated region
    $region6: #{encoder_forward.1} parent=1 // pred_check
      _
    $region7: #{encoder_forward.1} parent=1 // pred_check_branch
      %22 = sbr.rel (0) target = $region9
    $region8: #{encoder_forward.1} parent=1 // pred_region
      %s24 = ssub.s32 65536, 65536
      %25 = vsyncadd [#allocation3], %s24
      %s26 = sshll.u32 [#allocation2], 4
      %s27 = int_to_ptr.vmem [resolvable:$true] %s26
      %32 = dma.hbm_to_vmem [thread:$0]  %s1, 65536, %s27, [#allocation3], 512, 512, 32
    $region9: #{encoder_forward.1} parent=1 // pred_fallthru
      _
    // Predicated region
    $region10: #{encoder_forward.1} parent=1 // pred_check
      _
    $region11: #{encoder_forward.1} parent=1 // pred_check_branch
      %34 = sbr.rel (0) target = $region13
    $region12: #{encoder_forward.1} parent=1 // pred_region
      %s36 = ssub.s32 64, 64
      %37 = vsyncadd [#allocation6], %s36
      %s39 = sshll.u32 [#allocation5], 4
      %s40 = int_to_ptr.vmem [resolvable:$true] %s39
      %42 = dma.hbm_to_vmem [thread:$0]  %s2, 64, %s40, [#allocation6]
    $region13: #{encoder_forward.1} parent=1 // pred_fallthru
      _
    // Predicated region
    $region14: #{encoder_forward.1} parent=1 // pred_check
      _
    $region15: #{encoder_forward.1} parent=1 // pred_check_branch
      %44 = sbr.rel (0) target = $region17
    $region16: #{encoder_forward.1} parent=1 // pred_region
      %s46 = ssub.s32 16384, 16384
      %47 = vsyncadd [#allocation6], %s46
      %s48 = sshll.u32 [#allocation7], 4
      %s49 = int_to_ptr.vmem [resolvable:$true] %s48
      %54 = dma.hbm_to_vmem [thread:$0]  %s3, 16384, %s49, [#allocation6], 256, 256, 16
    $region17: #{encoder_forward.1} parent=1 // pred_fallthru
      _
    // Predicated region
    $region18: #{encoder_forward.1} parent=1 // pred_check
      _
    $region19: #{encoder_forward.1} parent=1 // pred_check_branch
      %56 = sbr.rel (0) target = $region21
    $region20: #{encoder_forward.1} parent=1 // pred_region
      %s58 = ssub.s32 32, 32
      %59 = vsyncadd [#allocation9], %s58
      %s61 = sshll.u32 [#allocation8], 4
      %s62 = int_to_ptr.vmem [resolvable:$true] %s61
      %64 = dma.hbm_to_vmem [thread:$0]  %s4, 32, %s62, [#allocation9]
    $region21: #{encoder_forward.1} parent=1 // pred_fallthru
      _
    // Predicated region
    $region22: #{encoder_forward.1} parent=1 // pred_check
      _
    $region23: #{encoder_forward.1} parent=1 // pred_check_branch
      %66 = sbr.rel (0) target = $region25
    $region24: #{encoder_forward.1} parent=1 // pred_region
      _
    $region25: #{encoder_forward.1} parent=1 // pred_fallthru
      _
    // Predicated region
    $region26: #{encoder_forward.1} parent=1 // pred_check
      _
    $region27: #{encoder_forward.1} parent=1 // pred_check_branch
      %68 = sbr.rel (0) target = $region29
    $region28: #{encoder_forward.1} parent=1 // pred_region
      %s70 = ssub.s32 16, 16
      %71 = vsyncadd [#allocation9], %s70
      %s73 = sshll.u32 [#allocation10], 4
      %s74 = int_to_ptr.vmem [resolvable:$true] %s73
      %76 = dma.hbm_to_vmem [thread:$0]  %s6, 16, %s74, [#allocation9]
    $region29: #{encoder_forward.1} parent=1 // pred_fallthru
      _
    // Predicated region
    $region30: #{encoder_forward.1} parent=1 // pred_check
      _
    $region31: #{encoder_forward.1} parent=1 // pred_check_branch
      %78 = sbr.rel (0) target = $region33
    $region32: #{encoder_forward.1} parent=1 // pred_region
      _
    $region33: #{encoder_forward.1} parent=1 // pred_fallthru
      _
    // Predicated region
    $region34: #{encoder_forward.1} parent=1 // pred_check
      _
    $region35: #{encoder_forward.1} parent=1 // pred_check_branch
      %80 = sbr.rel (0) target = $region37
    $region36: #{encoder_forward.1} parent=1 // pred_region
      %s82 = ssub.s32 16, 16
      %83 = vsyncadd [#allocation12], %s82
      %s85 = sshll.u32 [#allocation11], 4
      %s86 = int_to_ptr.vmem [resolvable:$true] %s85
      %88 = dma.hbm_to_vmem [thread:$0]  %s8, 16, %s86, [#allocation12]
    $region37: #{encoder_forward.1} parent=1 // pred_fallthru
      _
    // Predicated region
    $region38: #{encoder_forward.1} parent=1 // pred_check
      _
    $region39: #{encoder_forward.1} parent=1 // pred_check_branch
      %90 = sbr.rel (0) target = $region41
    $region40: #{encoder_forward.1} parent=1 // pred_region
      %91 = dma.done [#allocation3], 65536
    $region41: #{encoder_forward.1} parent=1 // pred_fallthru
      _
    // Predicated region
    $region42: #{encoder_forward.1} parent=1 // pred_check
      _
    $region43: #{encoder_forward.1} parent=1 // pred_check_branch
      %93 = sbr.rel (0) target = $region45
    $region44: #{encoder_forward.1} parent=1 // pred_region
      %94 = dma.done [#allocation6], 64
    $region45: #{encoder_forward.1} parent=1 // pred_fallthru
      _
    // Predicated region
    $region46: #{encoder_forward.1} parent=1 // pred_check
      _
    $region47: #{encoder_forward.1} parent=1 // pred_check_branch
      %96 = sbr.rel (0) target = $region49
    $region48: #{encoder_forward.1} parent=1 // pred_region
      %97 = dma.done [#allocation6], 16384
    $region49: #{encoder_forward.1} parent=1 // pred_fallthru
      _
    // Predicated region
    $region50: #{encoder_forward.1} parent=1 // pred_check
      _
    $region51: #{encoder_forward.1} parent=1 // pred_check_branch
      %99 = sbr.rel (0) target = $region53
    $region52: #{encoder_forward.1} parent=1 // pred_region
      %100 = dma.done [#allocation9], 32
    $region53: #{encoder_forward.1} parent=1 // pred_fallthru
      _
    // Predicated region
    $region54: #{encoder_forward.1} parent=1 // pred_check
      _
    $region55: #{encoder_forward.1} parent=1 // pred_check_branch
      %102 = sbr.rel (0) target = $region57
    $region56: #{encoder_forward.1} parent=1 // pred_region
      %103 = dma.done [#allocation9], 16
    $region57: #{encoder_forward.1} parent=1 // pred_fallthru
      _
    // Predicated region
    $region58: #{encoder_forward.1} parent=1 // pred_check
      _
    $region59: #{encoder_forward.1} parent=1 // pred_check_branch
      %105 = sbr.rel (0) target = $region61
    $region60: #{encoder_forward.1} parent=1 // pred_region
      %106 = dma.done [#allocation12], 16
    $region61: #{encoder_forward.1} parent=1 // pred_fallthru
      _
    %v107 = vld [vmem:[%s0] sm:$0xff]
    %v108 = vld [vmem:[%s0 + $0x8] sm:$0xff]
    %v109 = vld [vmem:[#allocation2] sm:$0xff]
    %v110 = vld [vmem:[#allocation2 + $0x8] sm:$0xff]
    %v111 = vld [vmem:[#allocation2 + $0x10] sm:$0xff]
    %v112 = vld [vmem:[#allocation2 + $0x18] sm:$0xff]
    %v113 = vld [vmem:[#allocation2 + $0x20] sm:$0xff]
    %v114 = vld [vmem:[#allocation2 + $0x28] sm:$0xff]
    %v115 = vld [vmem:[#allocation2 + $0x30] sm:$0xff]
    %v116 = vld [vmem:[#allocation2 + $0x38] sm:$0xff]
    %v117 = vld [vmem:[#allocation2 + $0x40] sm:$0xff]
    %v118 = vld [vmem:[#allocation2 + $0x48] sm:$0xff]
    %v119 = vld [vmem:[#allocation2 + $0x50] sm:$0xff]
    %v120 = vld [vmem:[#allocation2 + $0x58] sm:$0xff]
    %v121 = vld [vmem:[#allocation2 + $0x60] sm:$0xff]
    %v122 = vld [vmem:[#allocation2 + $0x68] sm:$0xff]
    %v123 = vld [vmem:[#allocation2 + $0x70] sm:$0xff]
    %v124 = vld [vmem:[#allocation2 + $0x78] sm:$0xff]
    %v125 = vld [vmem:[#allocation2 + $0x80] sm:$0xff]
    %v126 = vld [vmem:[#allocation2 + $0x88] sm:$0xff]
    %v127 = vld [vmem:[#allocation2 + $0x90] sm:$0xff]
    %v128 = vld [vmem:[#allocation2 + $0x98] sm:$0xff]
    %v129 = vld [vmem:[#allocation2 + $0xa0] sm:$0xff]
    %v130 = vld [vmem:[#allocation2 + $0xa8] sm:$0xff]
    %v131 = vld [vmem:[#allocation2 + $0xb0] sm:$0xff]
    %v132 = vld [vmem:[#allocation2 + $0xb8] sm:$0xff]
    %v133 = vld [vmem:[#allocation2 + $0xc0] sm:$0xff]
    %v134 = vld [vmem:[#allocation2 + $0xc8] sm:$0xff]
    %v135 = vld [vmem:[#allocation2 + $0xd0] sm:$0xff]
    %v136 = vld [vmem:[#allocation2 + $0xd8] sm:$0xff]
    %v137 = vld [vmem:[#allocation2 + $0xe0] sm:$0xff]
    %v138 = vld [vmem:[#allocation2 + $0xe8] sm:$0xff]
    %v139 = vld [vmem:[#allocation2 + $0xf0] sm:$0xff]
    %v140 = vld [vmem:[#allocation2 + $0xf8] sm:$0xff]
    %v141 = vld [vmem:[#allocation2 + $0x100] sm:$0xff]
    %v142 = vld [vmem:[#allocation2 + $0x108] sm:$0xff]
    %v143 = vld [vmem:[#allocation2 + $0x110] sm:$0xff]
    %v144 = vld [vmem:[#allocation2 + $0x118] sm:$0xff]
    %v145 = vld [vmem:[#allocation2 + $0x120] sm:$0xff]
    %v146 = vld [vmem:[#allocation2 + $0x128] sm:$0xff]
    %v147 = vld [vmem:[#allocation2 + $0x130] sm:$0xff]
    %v148 = vld [vmem:[#allocation2 + $0x138] sm:$0xff]
    %v149 = vld [vmem:[#allocation2 + $0x140] sm:$0xff]
    %v150 = vld [vmem:[#allocation2 + $0x148] sm:$0xff]
    %v151 = vld [vmem:[#allocation2 + $0x150] sm:$0xff]
    %v152 = vld [vmem:[#allocation2 + $0x158] sm:$0xff]
    %v153 = vld [vmem:[#allocation2 + $0x160] sm:$0xff]
    %v154 = vld [vmem:[#allocation2 + $0x168] sm:$0xff]
    %v155 = vld [vmem:[#allocation2 + $0x170] sm:$0xff]
    %v156 = vld [vmem:[#allocation2 + $0x178] sm:$0xff]
    %v157 = vld [vmem:[#allocation2 + $0x180] sm:$0xff]
    %v158 = vld [vmem:[#allocation2 + $0x188] sm:$0xff]
    %v159 = vld [vmem:[#allocation2 + $0x190] sm:$0xff]
    %v160 = vld [vmem:[#allocation2 + $0x198] sm:$0xff]
    %v161 = vld [vmem:[#allocation2 + $0x1a0] sm:$0xff]
    %v162 = vld [vmem:[#allocation2 + $0x1a8] sm:$0xff]
    %v163 = vld [vmem:[#allocation2 + $0x1b0] sm:$0xff]
    %v164 = vld [vmem:[#allocation2 + $0x1b8] sm:$0xff]
    %v165 = vld [vmem:[#allocation2 + $0x1c0] sm:$0xff]
    %v166 = vld [vmem:[#allocation2 + $0x1c8] sm:$0xff]
    %v167 = vld [vmem:[#allocation2 + $0x1d0] sm:$0xff]
    %v168 = vld [vmem:[#allocation2 + $0x1d8] sm:$0xff]
    %v169 = vld [vmem:[#allocation2 + $0x1e0] sm:$0xff]
    %v170 = vld [vmem:[#allocation2 + $0x1e8] sm:$0xff]
    %v171 = vld [vmem:[#allocation2 + $0x1f0] sm:$0xff]
    %v172 = vld [vmem:[#allocation2 + $0x1f8] sm:$0xff]
    %v173 = vld [vmem:[#allocation2 + $0x200] sm:$0xff]
    %v174 = vld [vmem:[#allocation2 + $0x208] sm:$0xff]
    %v175 = vld [vmem:[#allocation2 + $0x210] sm:$0xff]
    %v176 = vld [vmem:[#allocation2 + $0x218] sm:$0xff]
    %v177 = vld [vmem:[#allocation2 + $0x220] sm:$0xff]
    %v178 = vld [vmem:[#allocation2 + $0x228] sm:$0xff]
    %v179 = vld [vmem:[#allocation2 + $0x230] sm:$0xff]
    %v180 = vld [vmem:[#allocation2 + $0x238] sm:$0xff]
    %v181 = vld [vmem:[#allocation2 + $0x240] sm:$0xff]
    %v182 = vld [vmem:[#allocation2 + $0x248] sm:$0xff]
    %v183 = vld [vmem:[#allocation2 + $0x250] sm:$0xff]
    %v184 = vld [vmem:[#allocation2 + $0x258] sm:$0xff]
    %v185 = vld [vmem:[#allocation2 + $0x260] sm:$0xff]
    %v186 = vld [vmem:[#allocation2 + $0x268] sm:$0xff]
    %v187 = vld [vmem:[#allocation2 + $0x270] sm:$0xff]
    %v188 = vld [vmem:[#allocation2 + $0x278] sm:$0xff]
    %v189 = vld [vmem:[#allocation2 + $0x280] sm:$0xff]
    %v190 = vld [vmem:[#allocation2 + $0x288] sm:$0xff]
    %v191 = vld [vmem:[#allocation2 + $0x290] sm:$0xff]
    %v192 = vld [vmem:[#allocation2 + $0x298] sm:$0xff]
    %v193 = vld [vmem:[#allocation2 + $0x2a0] sm:$0xff]
    %v194 = vld [vmem:[#allocation2 + $0x2a8] sm:$0xff]
    %v195 = vld [vmem:[#allocation2 + $0x2b0] sm:$0xff]
    %v196 = vld [vmem:[#allocation2 + $0x2b8] sm:$0xff]
    %v197 = vld [vmem:[#allocation2 + $0x2c0] sm:$0xff]
    %v198 = vld [vmem:[#allocation2 + $0x2c8] sm:$0xff]
    %v199 = vld [vmem:[#allocation2 + $0x2d0] sm:$0xff]
    %v200 = vld [vmem:[#allocation2 + $0x2d8] sm:$0xff]
    %v201 = vld [vmem:[#allocation2 + $0x2e0] sm:$0xff]
    %v202 = vld [vmem:[#allocation2 + $0x2e8] sm:$0xff]
    %v203 = vld [vmem:[#allocation2 + $0x2f0] sm:$0xff]
    %v204 = vld [vmem:[#allocation2 + $0x2f8] sm:$0xff]
    %v205 = vld [vmem:[#allocation2 + $0x300] sm:$0xff]
    %v206 = vld [vmem:[#allocation2 + $0x308] sm:$0xff]
    %v207 = vld [vmem:[#allocation2 + $0x310] sm:$0xff]
    %v208 = vld [vmem:[#allocation2 + $0x318] sm:$0xff]
    %v209 = vld [vmem:[#allocation2 + $0x320] sm:$0xff]
    %v210 = vld [vmem:[#allocation2 + $0x328] sm:$0xff]
    %v211 = vld [vmem:[#allocation2 + $0x330] sm:$0xff]
    %v212 = vld [vmem:[#allocation2 + $0x338] sm:$0xff]
    %v213 = vld [vmem:[#allocation2 + $0x340] sm:$0xff]
    %v214 = vld [vmem:[#allocation2 + $0x348] sm:$0xff]
    %v215 = vld [vmem:[#allocation2 + $0x350] sm:$0xff]
    %v216 = vld [vmem:[#allocation2 + $0x358] sm:$0xff]
    %v217 = vld [vmem:[#allocation2 + $0x360] sm:$0xff]
    %v218 = vld [vmem:[#allocation2 + $0x368] sm:$0xff]
    %v219 = vld [vmem:[#allocation2 + $0x370] sm:$0xff]
    %v220 = vld [vmem:[#allocation2 + $0x378] sm:$0xff]
    %v221 = vld [vmem:[#allocation2 + $0x380] sm:$0xff]
    %v222 = vld [vmem:[#allocation2 + $0x388] sm:$0xff]
    %v223 = vld [vmem:[#allocation2 + $0x390] sm:$0xff]
    %v224 = vld [vmem:[#allocation2 + $0x398] sm:$0xff]
    %v225 = vld [vmem:[#allocation2 + $0x3a0] sm:$0xff]
    %v226 = vld [vmem:[#allocation2 + $0x3a8] sm:$0xff]
    %v227 = vld [vmem:[#allocation2 + $0x3b0] sm:$0xff]
    %v228 = vld [vmem:[#allocation2 + $0x3b8] sm:$0xff]
    %v229 = vld [vmem:[#allocation2 + $0x3c0] sm:$0xff]
    %v230 = vld [vmem:[#allocation2 + $0x3c8] sm:$0xff]
    %v231 = vld [vmem:[#allocation2 + $0x3d0] sm:$0xff]
    %v232 = vld [vmem:[#allocation2 + $0x3d8] sm:$0xff]
    %v233 = vld [vmem:[#allocation2 + $0x3e0] sm:$0xff]
    %v234 = vld [vmem:[#allocation2 + $0x3e8] sm:$0xff]
    %v235 = vld [vmem:[#allocation2 + $0x3f0] sm:$0xff]
    %v236 = vld [vmem:[#allocation2 + $0x3f8] sm:$0xff]
    %v237 = vld [vmem:[#allocation2 + $0x400] sm:$0xff]
    %v238 = vld [vmem:[#allocation2 + $0x408] sm:$0xff]
    %v239 = vld [vmem:[#allocation2 + $0x410] sm:$0xff]
    %v240 = vld [vmem:[#allocation2 + $0x418] sm:$0xff]
    %v241 = vld [vmem:[#allocation2 + $0x420] sm:$0xff]
    %v242 = vld [vmem:[#allocation2 + $0x428] sm:$0xff]
    %v243 = vld [vmem:[#allocation2 + $0x430] sm:$0xff]
    %v244 = vld [vmem:[#allocation2 + $0x438] sm:$0xff]
    %v245 = vld [vmem:[#allocation2 + $0x440] sm:$0xff]
    %v246 = vld [vmem:[#allocation2 + $0x448] sm:$0xff]
    %v247 = vld [vmem:[#allocation2 + $0x450] sm:$0xff]
    %v248 = vld [vmem:[#allocation2 + $0x458] sm:$0xff]
    %v249 = vld [vmem:[#allocation2 + $0x460] sm:$0xff]
    %v250 = vld [vmem:[#allocation2 + $0x468] sm:$0xff]
    %v251 = vld [vmem:[#allocation2 + $0x470] sm:$0xff]
    %v252 = vld [vmem:[#allocation2 + $0x478] sm:$0xff]
    %v253 = vld [vmem:[#allocation2 + $0x480] sm:$0xff]
    %v254 = vld [vmem:[#allocation2 + $0x488] sm:$0xff]
    %v255 = vld [vmem:[#allocation2 + $0x490] sm:$0xff]
    %v256 = vld [vmem:[#allocation2 + $0x498] sm:$0xff]
    %v257 = vld [vmem:[#allocation2 + $0x4a0] sm:$0xff]
    %v258 = vld [vmem:[#allocation2 + $0x4a8] sm:$0xff]
    %v259 = vld [vmem:[#allocation2 + $0x4b0] sm:$0xff]
    %v260 = vld [vmem:[#allocation2 + $0x4b8] sm:$0xff]
    %v261 = vld [vmem:[#allocation2 + $0x4c0] sm:$0xff]
    %v262 = vld [vmem:[#allocation2 + $0x4c8] sm:$0xff]
    %v263 = vld [vmem:[#allocation2 + $0x4d0] sm:$0xff]
    %v264 = vld [vmem:[#allocation2 + $0x4d8] sm:$0xff]
    %v265 = vld [vmem:[#allocation2 + $0x4e0] sm:$0xff]
    %v266 = vld [vmem:[#allocation2 + $0x4e8] sm:$0xff]
    %v267 = vld [vmem:[#allocation2 + $0x4f0] sm:$0xff]
    %v268 = vld [vmem:[#allocation2 + $0x4f8] sm:$0xff]
    %v269 = vld [vmem:[#allocation2 + $0x500] sm:$0xff]
    %v270 = vld [vmem:[#allocation2 + $0x508] sm:$0xff]
    %v271 = vld [vmem:[#allocation2 + $0x510] sm:$0xff]
    %v272 = vld [vmem:[#allocation2 + $0x518] sm:$0xff]
    %v273 = vld [vmem:[#allocation2 + $0x520] sm:$0xff]
    %v274 = vld [vmem:[#allocation2 + $0x528] sm:$0xff]
    %v275 = vld [vmem:[#allocation2 + $0x530] sm:$0xff]
    %v276 = vld [vmem:[#allocation2 + $0x538] sm:$0xff]
    %v277 = vld [vmem:[#allocation2 + $0x540] sm:$0xff]
    %v278 = vld [vmem:[#allocation2 + $0x548] sm:$0xff]
    %v279 = vld [vmem:[#allocation2 + $0x550] sm:$0xff]
    %v280 = vld [vmem:[#allocation2 + $0x558] sm:$0xff]
    %v281 = vld [vmem:[#allocation2 + $0x560] sm:$0xff]
    %v282 = vld [vmem:[#allocation2 + $0x568] sm:$0xff]
    %v283 = vld [vmem:[#allocation2 + $0x570] sm:$0xff]
    %v284 = vld [vmem:[#allocation2 + $0x578] sm:$0xff]
    %v285 = vld [vmem:[#allocation2 + $0x580] sm:$0xff]
    %v286 = vld [vmem:[#allocation2 + $0x588] sm:$0xff]
    %v287 = vld [vmem:[#allocation2 + $0x590] sm:$0xff]
    %v288 = vld [vmem:[#allocation2 + $0x598] sm:$0xff]
    %v289 = vld [vmem:[#allocation2 + $0x5a0] sm:$0xff]
    %v290 = vld [vmem:[#allocation2 + $0x5a8] sm:$0xff]
    %v291 = vld [vmem:[#allocation2 + $0x5b0] sm:$0xff]
    %v292 = vld [vmem:[#allocation2 + $0x5b8] sm:$0xff]
    %v293 = vld [vmem:[#allocation2 + $0x5c0] sm:$0xff]
    %v294 = vld [vmem:[#allocation2 + $0x5c8] sm:$0xff]
    %v295 = vld [vmem:[#allocation2 + $0x5d0] sm:$0xff]
    %v296 = vld [vmem:[#allocation2 + $0x5d8] sm:$0xff]
    %v297 = vld [vmem:[#allocation2 + $0x5e0] sm:$0xff]
    %v298 = vld [vmem:[#allocation2 + $0x5e8] sm:$0xff]
    %v299 = vld [vmem:[#allocation2 + $0x5f0] sm:$0xff]
    %v300 = vld [vmem:[#allocation2 + $0x5f8] sm:$0xff]
    %v301 = vld [vmem:[#allocation2 + $0x600] sm:$0xff]
    %v302 = vld [vmem:[#allocation2 + $0x608] sm:$0xff]
    %v303 = vld [vmem:[#allocation2 + $0x610] sm:$0xff]
    %v304 = vld [vmem:[#allocation2 + $0x618] sm:$0xff]
    %v305 = vld [vmem:[#allocation2 + $0x620] sm:$0xff]
    %v306 = vld [vmem:[#allocation2 + $0x628] sm:$0xff]
    %v307 = vld [vmem:[#allocation2 + $0x630] sm:$0xff]
    %v308 = vld [vmem:[#allocation2 + $0x638] sm:$0xff]
    %v309 = vld [vmem:[#allocation2 + $0x640] sm:$0xff]
    %v310 = vld [vmem:[#allocation2 + $0x648] sm:$0xff]
    %v311 = vld [vmem:[#allocation2 + $0x650] sm:$0xff]
    %v312 = vld [vmem:[#allocation2 + $0x658] sm:$0xff]
    %v313 = vld [vmem:[#allocation2 + $0x660] sm:$0xff]
    %v314 = vld [vmem:[#allocation2 + $0x668] sm:$0xff]
    %v315 = vld [vmem:[#allocation2 + $0x670] sm:$0xff]
    %v316 = vld [vmem:[#allocation2 + $0x678] sm:$0xff]
    %v317 = vld [vmem:[#allocation2 + $0x680] sm:$0xff]
    %v318 = vld [vmem:[#allocation2 + $0x688] sm:$0xff]
    %v319 = vld [vmem:[#allocation2 + $0x690] sm:$0xff]
    %v320 = vld [vmem:[#allocation2 + $0x698] sm:$0xff]
    %v321 = vld [vmem:[#allocation2 + $0x6a0] sm:$0xff]
    %v322 = vld [vmem:[#allocation2 + $0x6a8] sm:$0xff]
    %v323 = vld [vmem:[#allocation2 + $0x6b0] sm:$0xff]
    %v324 = vld [vmem:[#allocation2 + $0x6b8] sm:$0xff]
    %v325 = vld [vmem:[#allocation2 + $0x6c0] sm:$0xff]
    %v326 = vld [vmem:[#allocation2 + $0x6c8] sm:$0xff]
    %v327 = vld [vmem:[#allocation2 + $0x6d0] sm:$0xff]
    %v328 = vld [vmem:[#allocation2 + $0x6d8] sm:$0xff]
    %v329 = vld [vmem:[#allocation2 + $0x6e0] sm:$0xff]
    %v330 = vld [vmem:[#allocation2 + $0x6e8] sm:$0xff]
    %v331 = vld [vmem:[#allocation2 + $0x6f0] sm:$0xff]
    %v332 = vld [vmem:[#allocation2 + $0x6f8] sm:$0xff]
    %v333 = vld [vmem:[#allocation2 + $0x700] sm:$0xff]
    %v334 = vld [vmem:[#allocation2 + $0x708] sm:$0xff]
    %v335 = vld [vmem:[#allocation2 + $0x710] sm:$0xff]
    %v336 = vld [vmem:[#allocation2 + $0x718] sm:$0xff]
    %v337 = vld [vmem:[#allocation2 + $0x720] sm:$0xff]
    %v338 = vld [vmem:[#allocation2 + $0x728] sm:$0xff]
    %v339 = vld [vmem:[#allocation2 + $0x730] sm:$0xff]
    %v340 = vld [vmem:[#allocation2 + $0x738] sm:$0xff]
    %v341 = vld [vmem:[#allocation2 + $0x740] sm:$0xff]
    %v342 = vld [vmem:[#allocation2 + $0x748] sm:$0xff]
    %v343 = vld [vmem:[#allocation2 + $0x750] sm:$0xff]
    %v344 = vld [vmem:[#allocation2 + $0x758] sm:$0xff]
    %v345 = vld [vmem:[#allocation2 + $0x760] sm:$0xff]
    %v346 = vld [vmem:[#allocation2 + $0x768] sm:$0xff]
    %v347 = vld [vmem:[#allocation2 + $0x770] sm:$0xff]
    %v348 = vld [vmem:[#allocation2 + $0x778] sm:$0xff]
    %v349 = vld [vmem:[#allocation2 + $0x780] sm:$0xff]
    %v350 = vld [vmem:[#allocation2 + $0x788] sm:$0xff]
    %v351 = vld [vmem:[#allocation2 + $0x790] sm:$0xff]
    %v352 = vld [vmem:[#allocation2 + $0x798] sm:$0xff]
    %v353 = vld [vmem:[#allocation2 + $0x7a0] sm:$0xff]
    %v354 = vld [vmem:[#allocation2 + $0x7a8] sm:$0xff]
    %v355 = vld [vmem:[#allocation2 + $0x7b0] sm:$0xff]
    %v356 = vld [vmem:[#allocation2 + $0x7b8] sm:$0xff]
    %v357 = vld [vmem:[#allocation2 + $0x7c0] sm:$0xff]
    %v358 = vld [vmem:[#allocation2 + $0x7c8] sm:$0xff]
    %v359 = vld [vmem:[#allocation2 + $0x7d0] sm:$0xff]
    %v360 = vld [vmem:[#allocation2 + $0x7d8] sm:$0xff]
    %v361 = vld [vmem:[#allocation2 + $0x7e0] sm:$0xff]
    %v362 = vld [vmem:[#allocation2 + $0x7e8] sm:$0xff]
    %v363 = vld [vmem:[#allocation2 + $0x7f0] sm:$0xff]
    %v364 = vld [vmem:[#allocation2 + $0x7f8] sm:$0xff]
    %v365 = vld [vmem:[#allocation2 + $0x800] sm:$0xff]
    %v366 = vld [vmem:[#allocation2 + $0x808] sm:$0xff]
    %v367 = vld [vmem:[#allocation2 + $0x810] sm:$0xff]
    %v368 = vld [vmem:[#allocation2 + $0x818] sm:$0xff]
    %v369 = vld [vmem:[#allocation2 + $0x820] sm:$0xff]
    %v370 = vld [vmem:[#allocation2 + $0x828] sm:$0xff]
    %v371 = vld [vmem:[#allocation2 + $0x830] sm:$0xff]
    %v372 = vld [vmem:[#allocation2 + $0x838] sm:$0xff]
    %v373 = vld [vmem:[#allocation2 + $0x840] sm:$0xff]
    %v374 = vld [vmem:[#allocation2 + $0x848] sm:$0xff]
    %v375 = vld [vmem:[#allocation2 + $0x850] sm:$0xff]
    %v376 = vld [vmem:[#allocation2 + $0x858] sm:$0xff]
    %v377 = vld [vmem:[#allocation2 + $0x860] sm:$0xff]
    %v378 = vld [vmem:[#allocation2 + $0x868] sm:$0xff]
    %v379 = vld [vmem:[#allocation2 + $0x870] sm:$0xff]
    %v380 = vld [vmem:[#allocation2 + $0x878] sm:$0xff]
    %v381 = vld [vmem:[#allocation2 + $0x880] sm:$0xff]
    %v382 = vld [vmem:[#allocation2 + $0x888] sm:$0xff]
    %v383 = vld [vmem:[#allocation2 + $0x890] sm:$0xff]
    %v384 = vld [vmem:[#allocation2 + $0x898] sm:$0xff]
    %v385 = vld [vmem:[#allocation2 + $0x8a0] sm:$0xff]
    %v386 = vld [vmem:[#allocation2 + $0x8a8] sm:$0xff]
    %v387 = vld [vmem:[#allocation2 + $0x8b0] sm:$0xff]
    %v388 = vld [vmem:[#allocation2 + $0x8b8] sm:$0xff]
    %v389 = vld [vmem:[#allocation2 + $0x8c0] sm:$0xff]
    %v390 = vld [vmem:[#allocation2 + $0x8c8] sm:$0xff]
    %v391 = vld [vmem:[#allocation2 + $0x8d0] sm:$0xff]
    %v392 = vld [vmem:[#allocation2 + $0x8d8] sm:$0xff]
    %v393 = vld [vmem:[#allocation2 + $0x8e0] sm:$0xff]
    %v394 = vld [vmem:[#allocation2 + $0x8e8] sm:$0xff]
    %v395 = vld [vmem:[#allocation2 + $0x8f0] sm:$0xff]
    %v396 = vld [vmem:[#allocation2 + $0x8f8] sm:$0xff]
    %v397 = vld [vmem:[#allocation2 + $0x900] sm:$0xff]
    %v398 = vld [vmem:[#allocation2 + $0x908] sm:$0xff]
    %v399 = vld [vmem:[#allocation2 + $0x910] sm:$0xff]
    %v400 = vld [vmem:[#allocation2 + $0x918] sm:$0xff]
    %v401 = vld [vmem:[#allocation2 + $0x920] sm:$0xff]
    %v402 = vld [vmem:[#allocation2 + $0x928] sm:$0xff]
    %v403 = vld [vmem:[#allocation2 + $0x930] sm:$0xff]
    %v404 = vld [vmem:[#allocation2 + $0x938] sm:$0xff]
    %v405 = vld [vmem:[#allocation2 + $0x940] sm:$0xff]
    %v406 = vld [vmem:[#allocation2 + $0x948] sm:$0xff]
    %v407 = vld [vmem:[#allocation2 + $0x950] sm:$0xff]
    %v408 = vld [vmem:[#allocation2 + $0x958] sm:$0xff]
    %v409 = vld [vmem:[#allocation2 + $0x960] sm:$0xff]
    %v410 = vld [vmem:[#allocation2 + $0x968] sm:$0xff]
    %v411 = vld [vmem:[#allocation2 + $0x970] sm:$0xff]
    %v412 = vld [vmem:[#allocation2 + $0x978] sm:$0xff]
    %v413 = vld [vmem:[#allocation2 + $0x980] sm:$0xff]
    %v414 = vld [vmem:[#allocation2 + $0x988] sm:$0xff]
    %v415 = vld [vmem:[#allocation2 + $0x990] sm:$0xff]
    %v416 = vld [vmem:[#allocation2 + $0x998] sm:$0xff]
    %v417 = vld [vmem:[#allocation2 + $0x9a0] sm:$0xff]
    %v418 = vld [vmem:[#allocation2 + $0x9a8] sm:$0xff]
    %v419 = vld [vmem:[#allocation2 + $0x9b0] sm:$0xff]
    %v420 = vld [vmem:[#allocation2 + $0x9b8] sm:$0xff]
    %v421 = vld [vmem:[#allocation2 + $0x9c0] sm:$0xff]
    %v422 = vld [vmem:[#allocation2 + $0x9c8] sm:$0xff]
    %v423 = vld [vmem:[#allocation2 + $0x9d0] sm:$0xff]
    %v424 = vld [vmem:[#allocation2 + $0x9d8] sm:$0xff]
    %v425 = vld [vmem:[#allocation2 + $0x9e0] sm:$0xff]
    %v426 = vld [vmem:[#allocation2 + $0x9e8] sm:$0xff]
    %v427 = vld [vmem:[#allocation2 + $0x9f0] sm:$0xff]
    %v428 = vld [vmem:[#allocation2 + $0x9f8] sm:$0xff]
    %v429 = vld [vmem:[#allocation2 + $0xa00] sm:$0xff]
    %v430 = vld [vmem:[#allocation2 + $0xa08] sm:$0xff]
    %v431 = vld [vmem:[#allocation2 + $0xa10] sm:$0xff]
    %v432 = vld [vmem:[#allocation2 + $0xa18] sm:$0xff]
    %v433 = vld [vmem:[#allocation2 + $0xa20] sm:$0xff]
    %v434 = vld [vmem:[#allocation2 + $0xa28] sm:$0xff]
    %v435 = vld [vmem:[#allocation2 + $0xa30] sm:$0xff]
    %v436 = vld [vmem:[#allocation2 + $0xa38] sm:$0xff]
    %v437 = vld [vmem:[#allocation2 + $0xa40] sm:$0xff]
    %v438 = vld [vmem:[#allocation2 + $0xa48] sm:$0xff]
    %v439 = vld [vmem:[#allocation2 + $0xa50] sm:$0xff]
    %v440 = vld [vmem:[#allocation2 + $0xa58] sm:$0xff]
    %v441 = vld [vmem:[#allocation2 + $0xa60] sm:$0xff]
    %v442 = vld [vmem:[#allocation2 + $0xa68] sm:$0xff]
    %v443 = vld [vmem:[#allocation2 + $0xa70] sm:$0xff]
    %v444 = vld [vmem:[#allocation2 + $0xa78] sm:$0xff]
    %v445 = vld [vmem:[#allocation2 + $0xa80] sm:$0xff]
    %v446 = vld [vmem:[#allocation2 + $0xa88] sm:$0xff]
    %v447 = vld [vmem:[#allocation2 + $0xa90] sm:$0xff]
    %v448 = vld [vmem:[#allocation2 + $0xa98] sm:$0xff]
    %v449 = vld [vmem:[#allocation2 + $0xaa0] sm:$0xff]
    %v450 = vld [vmem:[#allocation2 + $0xaa8] sm:$0xff]
    %v451 = vld [vmem:[#allocation2 + $0xab0] sm:$0xff]
    %v452 = vld [vmem:[#allocation2 + $0xab8] sm:$0xff]
    %v453 = vld [vmem:[#allocation2 + $0xac0] sm:$0xff]
    %v454 = vld [vmem:[#allocation2 + $0xac8] sm:$0xff]
    %v455 = vld [vmem:[#allocation2 + $0xad0] sm:$0xff]
    %v456 = vld [vmem:[#allocation2 + $0xad8] sm:$0xff]
    %v457 = vld [vmem:[#allocation2 + $0xae0] sm:$0xff]
    %v458 = vld [vmem:[#allocation2 + $0xae8] sm:$0xff]
    %v459 = vld [vmem:[#allocation2 + $0xaf0] sm:$0xff]
    %v460 = vld [vmem:[#allocation2 + $0xaf8] sm:$0xff]
    %v461 = vld [vmem:[#allocation2 + $0xb00] sm:$0xff]
    %v462 = vld [vmem:[#allocation2 + $0xb08] sm:$0xff]
    %v463 = vld [vmem:[#allocation2 + $0xb10] sm:$0xff]
    %v464 = vld [vmem:[#allocation2 + $0xb18] sm:$0xff]
    %v465 = vld [vmem:[#allocation2 + $0xb20] sm:$0xff]
    %v466 = vld [vmem:[#allocation2 + $0xb28] sm:$0xff]
    %v467 = vld [vmem:[#allocation2 + $0xb30] sm:$0xff]
    %v468 = vld [vmem:[#allocation2 + $0xb38] sm:$0xff]
    %v469 = vld [vmem:[#allocation2 + $0xb40] sm:$0xff]
    %v470 = vld [vmem:[#allocation2 + $0xb48] sm:$0xff]
    %v471 = vld [vmem:[#allocation2 + $0xb50] sm:$0xff]
    %v472 = vld [vmem:[#allocation2 + $0xb58] sm:$0xff]
    %v473 = vld [vmem:[#allocation2 + $0xb60] sm:$0xff]
    %v474 = vld [vmem:[#allocation2 + $0xb68] sm:$0xff]
    %v475 = vld [vmem:[#allocation2 + $0xb70] sm:$0xff]
    %v476 = vld [vmem:[#allocation2 + $0xb78] sm:$0xff]
    %v477 = vld [vmem:[#allocation2 + $0xb80] sm:$0xff]
    %v478 = vld [vmem:[#allocation2 + $0xb88] sm:$0xff]
    %v479 = vld [vmem:[#allocation2 + $0xb90] sm:$0xff]
    %v480 = vld [vmem:[#allocation2 + $0xb98] sm:$0xff]
    %v481 = vld [vmem:[#allocation2 + $0xba0] sm:$0xff]
    %v482 = vld [vmem:[#allocation2 + $0xba8] sm:$0xff]
    %v483 = vld [vmem:[#allocation2 + $0xbb0] sm:$0xff]
    %v484 = vld [vmem:[#allocation2 + $0xbb8] sm:$0xff]
    %v485 = vld [vmem:[#allocation2 + $0xbc0] sm:$0xff]
    %v486 = vld [vmem:[#allocation2 + $0xbc8] sm:$0xff]
    %v487 = vld [vmem:[#allocation2 + $0xbd0] sm:$0xff]
    %v488 = vld [vmem:[#allocation2 + $0xbd8] sm:$0xff]
    %v489 = vld [vmem:[#allocation2 + $0xbe0] sm:$0xff]
    %v490 = vld [vmem:[#allocation2 + $0xbe8] sm:$0xff]
    %v491 = vld [vmem:[#allocation2 + $0xbf0] sm:$0xff]
    %v492 = vld [vmem:[#allocation2 + $0xbf8] sm:$0xff]
    %v493 = vld [vmem:[#allocation2 + $0xc00] sm:$0xff]
    %v494 = vld [vmem:[#allocation2 + $0xc08] sm:$0xff]
    %v495 = vld [vmem:[#allocation2 + $0xc10] sm:$0xff]
    %v496 = vld [vmem:[#allocation2 + $0xc18] sm:$0xff]
    %v497 = vld [vmem:[#allocation2 + $0xc20] sm:$0xff]
    %v498 = vld [vmem:[#allocation2 + $0xc28] sm:$0xff]
    %v499 = vld [vmem:[#allocation2 + $0xc30] sm:$0xff]
    %v500 = vld [vmem:[#allocation2 + $0xc38] sm:$0xff]
    %v501 = vld [vmem:[#allocation2 + $0xc40] sm:$0xff]
    %v502 = vld [vmem:[#allocation2 + $0xc48] sm:$0xff]
    %v503 = vld [vmem:[#allocation2 + $0xc50] sm:$0xff]
    %v504 = vld [vmem:[#allocation2 + $0xc58] sm:$0xff]
    %v505 = vld [vmem:[#allocation2 + $0xc60] sm:$0xff]
    %v506 = vld [vmem:[#allocation2 + $0xc68] sm:$0xff]
    %v507 = vld [vmem:[#allocation2 + $0xc70] sm:$0xff]
    %v508 = vld [vmem:[#allocation2 + $0xc78] sm:$0xff]
    %v509 = vld [vmem:[#allocation2 + $0xc80] sm:$0xff]
    %v510 = vld [vmem:[#allocation2 + $0xc88] sm:$0xff]
    %v511 = vld [vmem:[#allocation2 + $0xc90] sm:$0xff]
    %v512 = vld [vmem:[#allocation2 + $0xc98] sm:$0xff]
    %v513 = vld [vmem:[#allocation2 + $0xca0] sm:$0xff]
    %v514 = vld [vmem:[#allocation2 + $0xca8] sm:$0xff]
    %v515 = vld [vmem:[#allocation2 + $0xcb0] sm:$0xff]
    %v516 = vld [vmem:[#allocation2 + $0xcb8] sm:$0xff]
    %v517 = vld [vmem:[#allocation2 + $0xcc0] sm:$0xff]
    %v518 = vld [vmem:[#allocation2 + $0xcc8] sm:$0xff]
    %v519 = vld [vmem:[#allocation2 + $0xcd0] sm:$0xff]
    %v520 = vld [vmem:[#allocation2 + $0xcd8] sm:$0xff]
    %v521 = vld [vmem:[#allocation2 + $0xce0] sm:$0xff]
    %v522 = vld [vmem:[#allocation2 + $0xce8] sm:$0xff]
    %v523 = vld [vmem:[#allocation2 + $0xcf0] sm:$0xff]
    %v524 = vld [vmem:[#allocation2 + $0xcf8] sm:$0xff]
    %v525 = vld [vmem:[#allocation2 + $0xd00] sm:$0xff]
    %v526 = vld [vmem:[#allocation2 + $0xd08] sm:$0xff]
    %v527 = vld [vmem:[#allocation2 + $0xd10] sm:$0xff]
    %v528 = vld [vmem:[#allocation2 + $0xd18] sm:$0xff]
    %v529 = vld [vmem:[#allocation2 + $0xd20] sm:$0xff]
    %v530 = vld [vmem:[#allocation2 + $0xd28] sm:$0xff]
    %v531 = vld [vmem:[#allocation2 + $0xd30] sm:$0xff]
    %v532 = vld [vmem:[#allocation2 + $0xd38] sm:$0xff]
    %v533 = vld [vmem:[#allocation2 + $0xd40] sm:$0xff]
    %v534 = vld [vmem:[#allocation2 + $0xd48] sm:$0xff]
    %v535 = vld [vmem:[#allocation2 + $0xd50] sm:$0xff]
    %v536 = vld [vmem:[#allocation2 + $0xd58] sm:$0xff]
    %v537 = vld [vmem:[#allocation2 + $0xd60] sm:$0xff]
    %v538 = vld [vmem:[#allocation2 + $0xd68] sm:$0xff]
    %v539 = vld [vmem:[#allocation2 + $0xd70] sm:$0xff]
    %v540 = vld [vmem:[#allocation2 + $0xd78] sm:$0xff]
    %v541 = vld [vmem:[#allocation2 + $0xd80] sm:$0xff]
    %v542 = vld [vmem:[#allocation2 + $0xd88] sm:$0xff]
    %v543 = vld [vmem:[#allocation2 + $0xd90] sm:$0xff]
    %v544 = vld [vmem:[#allocation2 + $0xd98] sm:$0xff]
    %v545 = vld [vmem:[#allocation2 + $0xda0] sm:$0xff]
    %v546 = vld [vmem:[#allocation2 + $0xda8] sm:$0xff]
    %v547 = vld [vmem:[#allocation2 + $0xdb0] sm:$0xff]
    %v548 = vld [vmem:[#allocation2 + $0xdb8] sm:$0xff]
    %v549 = vld [vmem:[#allocation2 + $0xdc0] sm:$0xff]
    %v550 = vld [vmem:[#allocation2 + $0xdc8] sm:$0xff]
    %v551 = vld [vmem:[#allocation2 + $0xdd0] sm:$0xff]
    %v552 = vld [vmem:[#allocation2 + $0xdd8] sm:$0xff]
    %v553 = vld [vmem:[#allocation2 + $0xde0] sm:$0xff]
    %v554 = vld [vmem:[#allocation2 + $0xde8] sm:$0xff]
    %v555 = vld [vmem:[#allocation2 + $0xdf0] sm:$0xff]
    %v556 = vld [vmem:[#allocation2 + $0xdf8] sm:$0xff]
    %v557 = vld [vmem:[#allocation2 + $0xe00] sm:$0xff]
    %v558 = vld [vmem:[#allocation2 + $0xe08] sm:$0xff]
    %v559 = vld [vmem:[#allocation2 + $0xe10] sm:$0xff]
    %v560 = vld [vmem:[#allocation2 + $0xe18] sm:$0xff]
    %v561 = vld [vmem:[#allocation2 + $0xe20] sm:$0xff]
    %v562 = vld [vmem:[#allocation2 + $0xe28] sm:$0xff]
    %v563 = vld [vmem:[#allocation2 + $0xe30] sm:$0xff]
    %v564 = vld [vmem:[#allocation2 + $0xe38] sm:$0xff]
    %v565 = vld [vmem:[#allocation2 + $0xe40] sm:$0xff]
    %v566 = vld [vmem:[#allocation2 + $0xe48] sm:$0xff]
    %v567 = vld [vmem:[#allocation2 + $0xe50] sm:$0xff]
    %v568 = vld [vmem:[#allocation2 + $0xe58] sm:$0xff]
    %v569 = vld [vmem:[#allocation2 + $0xe60] sm:$0xff]
    %v570 = vld [vmem:[#allocation2 + $0xe68] sm:$0xff]
    %v571 = vld [vmem:[#allocation2 + $0xe70] sm:$0xff]
    %v572 = vld [vmem:[#allocation2 + $0xe78] sm:$0xff]
    %v573 = vld [vmem:[#allocation2 + $0xe80] sm:$0xff]
    %v574 = vld [vmem:[#allocation2 + $0xe88] sm:$0xff]
    %v575 = vld [vmem:[#allocation2 + $0xe90] sm:$0xff]
    %v576 = vld [vmem:[#allocation2 + $0xe98] sm:$0xff]
    %v577 = vld [vmem:[#allocation2 + $0xea0] sm:$0xff]
    %v578 = vld [vmem:[#allocation2 + $0xea8] sm:$0xff]
    %v579 = vld [vmem:[#allocation2 + $0xeb0] sm:$0xff]
    %v580 = vld [vmem:[#allocation2 + $0xeb8] sm:$0xff]
    %v581 = vld [vmem:[#allocation2 + $0xec0] sm:$0xff]
    %v582 = vld [vmem:[#allocation2 + $0xec8] sm:$0xff]
    %v583 = vld [vmem:[#allocation2 + $0xed0] sm:$0xff]
    %v584 = vld [vmem:[#allocation2 + $0xed8] sm:$0xff]
    %v585 = vld [vmem:[#allocation2 + $0xee0] sm:$0xff]
    %v586 = vld [vmem:[#allocation2 + $0xee8] sm:$0xff]
    %v587 = vld [vmem:[#allocation2 + $0xef0] sm:$0xff]
    %v588 = vld [vmem:[#allocation2 + $0xef8] sm:$0xff]
    %v589 = vld [vmem:[#allocation2 + $0xf00] sm:$0xff]
    %v590 = vld [vmem:[#allocation2 + $0xf08] sm:$0xff]
    %v591 = vld [vmem:[#allocation2 + $0xf10] sm:$0xff]
    %v592 = vld [vmem:[#allocation2 + $0xf18] sm:$0xff]
    %v593 = vld [vmem:[#allocation2 + $0xf20] sm:$0xff]
    %v594 = vld [vmem:[#allocation2 + $0xf28] sm:$0xff]
    %v595 = vld [vmem:[#allocation2 + $0xf30] sm:$0xff]
    %v596 = vld [vmem:[#allocation2 + $0xf38] sm:$0xff]
    %v597 = vld [vmem:[#allocation2 + $0xf40] sm:$0xff]
    %v598 = vld [vmem:[#allocation2 + $0xf48] sm:$0xff]
    %v599 = vld [vmem:[#allocation2 + $0xf50] sm:$0xff]
    %v600 = vld [vmem:[#allocation2 + $0xf58] sm:$0xff]
    %v601 = vld [vmem:[#allocation2 + $0xf60] sm:$0xff]
    %v602 = vld [vmem:[#allocation2 + $0xf68] sm:$0xff]
    %v603 = vld [vmem:[#allocation2 + $0xf70] sm:$0xff]
    %v604 = vld [vmem:[#allocation2 + $0xf78] sm:$0xff]
    %v605 = vld [vmem:[#allocation2 + $0xf80] sm:$0xff]
    %v606 = vld [vmem:[#allocation2 + $0xf88] sm:$0xff]
    %v607 = vld [vmem:[#allocation2 + $0xf90] sm:$0xff]
    %v608 = vld [vmem:[#allocation2 + $0xf98] sm:$0xff]
    %v609 = vld [vmem:[#allocation2 + $0xfa0] sm:$0xff]
    %v610 = vld [vmem:[#allocation2 + $0xfa8] sm:$0xff]
    %v611 = vld [vmem:[#allocation2 + $0xfb0] sm:$0xff]
    %v612 = vld [vmem:[#allocation2 + $0xfb8] sm:$0xff]
    %v613 = vld [vmem:[#allocation2 + $0xfc0] sm:$0xff]
    %v614 = vld [vmem:[#allocation2 + $0xfc8] sm:$0xff]
    %v615 = vld [vmem:[#allocation2 + $0xfd0] sm:$0xff]
    %v616 = vld [vmem:[#allocation2 + $0xfd8] sm:$0xff]
    %v617 = vld [vmem:[#allocation2 + $0xfe0] sm:$0xff]
    %v618 = vld [vmem:[#allocation2 + $0xfe8] sm:$0xff]
    %v619 = vld [vmem:[#allocation2 + $0xff0] sm:$0xff]
    %v620 = vld [vmem:[#allocation2 + $0xff8] sm:$0xff]
    %v621 = vld [vmem:[#allocation5] sm:$0xf]
    %v623 = vlaneseq
    %v624 = vshrl.u32 %v623, 7
    %v625 = vsub.s32 0, %v624
    %v626 = vrot.slane %v621, %v625
    %v627 = vlaneseq
    %v628 = vshrl.u32 %v627, 7
    %v629 = vsub.s32 1, %v628
    %v630 = vrot.slane %v621, %v629
    %v631 = vlaneseq
    %v632 = vshrl.u32 %v631, 7
    %v633 = vsub.s32 2, %v632
    %v634 = vrot.slane %v621, %v633
    %v635 = vlaneseq
    %v636 = vshrl.u32 %v635, 7
    %v637 = vsub.s32 3, %v636
    %v638 = vrot.slane %v621, %v637
    %v645 = vcombine.high %v107, %v107
    %v647 = vunpack.c.l.s4 1983009808
    %v648 = vunpack.c.0.s8 %v647
    %v649 = vlaneseq
    %v650 = vshrl.u32 %v649, 7
    %v651 = vsub.s32 %v648, %v650
    %v652 = vrot.slane %v107, %v651
    %v654 = vunpack.c.l.s4 1983009808
    %v655 = vunpack.c.0.s8 %v654
    %v656 = vlaneseq
    %v657 = vshrl.u32 %v656, 7
    %v658 = vsub.s32 %v655, %v657
    %v659 = vrot.slane %v645, %v658
    %v660 = vcombine.high %v652, %v652
    %v661 = vcombine.high %v659, %v659
    %v662 = vcombine.high %v108, %v108
    %v664 = vunpack.c.l.s4 1983009808
    %v665 = vunpack.c.0.s8 %v664
    %v666 = vlaneseq
    %v667 = vshrl.u32 %v666, 7
    %v668 = vsub.s32 %v665, %v667
    %v669 = vrot.slane %v108, %v668
    %v671 = vunpack.c.l.s4 1983009808
    %v672 = vunpack.c.0.s8 %v671
    %v673 = vlaneseq
    %v674 = vshrl.u32 %v673, 7
    %v675 = vsub.s32 %v672, %v674
    %v676 = vrot.slane %v662, %v675
    %v677 = vcombine.high %v669, %v669
    %v678 = vcombine.high %v676, %v676
    %687 = vmatprep.subr.mxu0 %v110
    %688 = vmatpush1.msra.mxu0 %v109
    %689 = vmatprep.subr.mxu0 %v114
    %690 = vmatpush1.msra.mxu0 %v113
    %691 = vmatprep.subr.mxu0 %v118
    %692 = vmatpush1.msra.mxu0 %v117
    %693 = vmatprep.subr.mxu0 %v122
    %694 = vmatpush1.msra.mxu0 %v121
    %695 = vmatprep.subr.mxu0 %v126
    %696 = vmatpush1.msra.mxu0 %v125
    %697 = vmatprep.subr.mxu0 %v130
    %698 = vmatpush1.msra.mxu0 %v129
    %699 = vmatprep.subr.mxu0 %v134
    %700 = vmatpush1.msra.mxu0 %v133
    %701 = vmatprep.subr.mxu0 %v138
    %702 = vmatpush1.msra.mxu0 %v137
    %703 = vmatprep.subr.mxu0 %v142
    %704 = vmatpush1.msra.mxu0 %v141
    %705 = vmatprep.subr.mxu0 %v146
    %706 = vmatpush1.msra.mxu0 %v145
    %707 = vmatprep.subr.mxu0 %v150
    %708 = vmatpush1.msra.mxu0 %v149
    %709 = vmatprep.subr.mxu0 %v154
    %710 = vmatpush1.msra.mxu0 %v153
    %711 = vmatprep.subr.mxu0 %v158
    %712 = vmatpush1.msra.mxu0 %v157
    %713 = vmatprep.subr.mxu0 %v162
    %714 = vmatpush1.msra.mxu0 %v161
    %715 = vmatprep.subr.mxu0 %v166
    %716 = vmatpush1.msra.mxu0 %v165
    %717 = vmatprep.subr.mxu0 %v170
    %718 = vmatpush1.msra.mxu0 %v169
    %719 = vmatprep.subr.mxu0 %v174
    %720 = vmatpush1.msra.mxu0 %v173
    %721 = vmatprep.subr.mxu0 %v178
    %722 = vmatpush1.msra.mxu0 %v177
    %723 = vmatprep.subr.mxu0 %v182
    %724 = vmatpush1.msra.mxu0 %v181
    %725 = vmatprep.subr.mxu0 %v186
    %726 = vmatpush1.msra.mxu0 %v185
    %727 = vmatprep.subr.mxu0 %v190
    %728 = vmatpush1.msra.mxu0 %v189
    %729 = vmatprep.subr.mxu0 %v194
    %730 = vmatpush1.msra.mxu0 %v193
    %731 = vmatprep.subr.mxu0 %v198
    %732 = vmatpush1.msra.mxu0 %v197
    %733 = vmatprep.subr.mxu0 %v202
    %734 = vmatpush1.msra.mxu0 %v201
    %735 = vmatprep.subr.mxu0 %v206
    %736 = vmatpush1.msra.mxu0 %v205
    %737 = vmatprep.subr.mxu0 %v210
    %738 = vmatpush1.msra.mxu0 %v209
    %739 = vmatprep.subr.mxu0 %v214
    %740 = vmatpush1.msra.mxu0 %v213
    %741 = vmatprep.subr.mxu0 %v218
    %742 = vmatpush1.msra.mxu0 %v217
    %743 = vmatprep.subr.mxu0 %v222
    %744 = vmatpush1.msra.mxu0 %v221
    %745 = vmatprep.subr.mxu0 %v226
    %746 = vmatpush1.msra.mxu0 %v225
    %747 = vmatprep.subr.mxu0 %v230
    %748 = vmatpush1.msra.mxu0 %v229
    %749 = vmatprep.subr.mxu0 %v234
    %750 = vmatpush1.msra.mxu0 %v233
    %751 = vmatprep.mubr.f32.mxu0 %v660
    %752 = vmatmul.mubr.f32.gmra.mrb[0].mxu0 %v652
    %v753 = vpop.f32.mrb[0].mxu0
    %v754 = vadd.f32 %v626, %v753
    %v755 = vpop.f32.mrb[0].mxu0
    %v756 = vadd.f32 %v630, %v755
    %757 = vdwg.mxu0
    %758 = vmatprep.subr.mxu0 %v238
    %759 = vmatpush1.msra.mxu0 %v237
    %760 = vmatprep.subr.mxu0 %v242
    %761 = vmatpush1.msra.mxu0 %v241
    %762 = vmatprep.subr.mxu0 %v246
    %763 = vmatpush1.msra.mxu0 %v245
    %764 = vmatprep.subr.mxu0 %v250
    %765 = vmatpush1.msra.mxu0 %v249
    %766 = vmatprep.subr.mxu0 %v254
    %767 = vmatpush1.msra.mxu0 %v253
    %768 = vmatprep.subr.mxu0 %v258
    %769 = vmatpush1.msra.mxu0 %v257
    %770 = vmatprep.subr.mxu0 %v262
    %771 = vmatpush1.msra.mxu0 %v261
    %772 = vmatprep.subr.mxu0 %v266
    %773 = vmatpush1.msra.mxu0 %v265
    %774 = vmatprep.subr.mxu0 %v270
    %775 = vmatpush1.msra.mxu0 %v269
    %776 = vmatprep.subr.mxu0 %v274
    %777 = vmatpush1.msra.mxu0 %v273
    %778 = vmatprep.subr.mxu0 %v278
    %779 = vmatpush1.msra.mxu0 %v277
    %780 = vmatprep.subr.mxu0 %v282
    %781 = vmatpush1.msra.mxu0 %v281
    %782 = vmatprep.subr.mxu0 %v286
    %783 = vmatpush1.msra.mxu0 %v285
    %784 = vmatprep.subr.mxu0 %v290
    %785 = vmatpush1.msra.mxu0 %v289
    %786 = vmatprep.subr.mxu0 %v294
    %787 = vmatpush1.msra.mxu0 %v293
    %788 = vmatprep.subr.mxu0 %v298
    %789 = vmatpush1.msra.mxu0 %v297
    %790 = vmatprep.subr.mxu0 %v302
    %791 = vmatpush1.msra.mxu0 %v301
    %792 = vmatprep.subr.mxu0 %v306
    %793 = vmatpush1.msra.mxu0 %v305
    %794 = vmatprep.subr.mxu0 %v310
    %795 = vmatpush1.msra.mxu0 %v309
    %796 = vmatprep.subr.mxu0 %v314
    %797 = vmatpush1.msra.mxu0 %v313
    %798 = vmatprep.subr.mxu0 %v318
    %799 = vmatpush1.msra.mxu0 %v317
    %800 = vmatprep.subr.mxu0 %v322
    %801 = vmatpush1.msra.mxu0 %v321
    %802 = vmatprep.subr.mxu0 %v326
    %803 = vmatpush1.msra.mxu0 %v325
    %804 = vmatprep.subr.mxu0 %v330
    %805 = vmatpush1.msra.mxu0 %v329
    %806 = vmatprep.subr.mxu0 %v334
    %807 = vmatpush1.msra.mxu0 %v333
    %808 = vmatprep.subr.mxu0 %v338
    %809 = vmatpush1.msra.mxu0 %v337
    %810 = vmatprep.subr.mxu0 %v342
    %811 = vmatpush1.msra.mxu0 %v341
    %812 = vmatprep.subr.mxu0 %v346
    %813 = vmatpush1.msra.mxu0 %v345
    %814 = vmatprep.subr.mxu0 %v350
    %815 = vmatpush1.msra.mxu0 %v349
    %816 = vmatprep.subr.mxu0 %v354
    %817 = vmatpush1.msra.mxu0 %v353
    %818 = vmatprep.subr.mxu0 %v358
    %819 = vmatpush1.msra.mxu0 %v357
    %820 = vmatprep.subr.mxu0 %v362
    %821 = vmatpush1.msra.mxu0 %v361
    %822 = vmatprep.mubr.f32.mxu0 %v661
    %823 = vmatmul.mubr.f32.gmra.mrb[0].mxu0 %v659
    %v824 = vpop.f32.mrb[0].mxu0
    %v825 = vadd.f32 %v754, %v824
    %v826 = vpop.f32.mrb[0].mxu0
    %v827 = vadd.f32 %v756, %v826
    %828 = vdwg.mxu0
    %829 = vmatprep.subr.mxu0 %v366
    %830 = vmatpush1.msra.mxu0 %v365
    %831 = vmatprep.subr.mxu0 %v370
    %832 = vmatpush1.msra.mxu0 %v369
    %833 = vmatprep.subr.mxu0 %v374
    %834 = vmatpush1.msra.mxu0 %v373
    %835 = vmatprep.subr.mxu0 %v378
    %836 = vmatpush1.msra.mxu0 %v377
    %837 = vmatprep.subr.mxu0 %v382
    %838 = vmatpush1.msra.mxu0 %v381
    %839 = vmatprep.subr.mxu0 %v386
    %840 = vmatpush1.msra.mxu0 %v385
    %841 = vmatprep.subr.mxu0 %v390
    %842 = vmatpush1.msra.mxu0 %v389
    %843 = vmatprep.subr.mxu0 %v394
    %844 = vmatpush1.msra.mxu0 %v393
    %845 = vmatprep.subr.mxu0 %v398
    %846 = vmatpush1.msra.mxu0 %v397
    %847 = vmatprep.subr.mxu0 %v402
    %848 = vmatpush1.msra.mxu0 %v401
    %849 = vmatprep.subr.mxu0 %v406
    %850 = vmatpush1.msra.mxu0 %v405
    %851 = vmatprep.subr.mxu0 %v410
    %852 = vmatpush1.msra.mxu0 %v409
    %853 = vmatprep.subr.mxu0 %v414
    %854 = vmatpush1.msra.mxu0 %v413
    %855 = vmatprep.subr.mxu0 %v418
    %856 = vmatpush1.msra.mxu0 %v417
    %857 = vmatprep.subr.mxu0 %v422
    %858 = vmatpush1.msra.mxu0 %v421
    %859 = vmatprep.subr.mxu0 %v426
    %860 = vmatpush1.msra.mxu0 %v425
    %861 = vmatprep.subr.mxu0 %v430
    %862 = vmatpush1.msra.mxu0 %v429
    %863 = vmatprep.subr.mxu0 %v434
    %864 = vmatpush1.msra.mxu0 %v433
    %865 = vmatprep.subr.mxu0 %v438
    %866 = vmatpush1.msra.mxu0 %v437
    %867 = vmatprep.subr.mxu0 %v442
    %868 = vmatpush1.msra.mxu0 %v441
    %869 = vmatprep.subr.mxu0 %v446
    %870 = vmatpush1.msra.mxu0 %v445
    %871 = vmatprep.subr.mxu0 %v450
    %872 = vmatpush1.msra.mxu0 %v449
    %873 = vmatprep.subr.mxu0 %v454
    %874 = vmatpush1.msra.mxu0 %v453
    %875 = vmatprep.subr.mxu0 %v458
    %876 = vmatpush1.msra.mxu0 %v457
    %877 = vmatprep.subr.mxu0 %v462
    %878 = vmatpush1.msra.mxu0 %v461
    %879 = vmatprep.subr.mxu0 %v466
    %880 = vmatpush1.msra.mxu0 %v465
    %881 = vmatprep.subr.mxu0 %v470
    %882 = vmatpush1.msra.mxu0 %v469
    %883 = vmatprep.subr.mxu0 %v474
    %884 = vmatpush1.msra.mxu0 %v473
    %885 = vmatprep.subr.mxu0 %v478
    %886 = vmatpush1.msra.mxu0 %v477
    %887 = vmatprep.subr.mxu0 %v482
    %888 = vmatpush1.msra.mxu0 %v481
    %889 = vmatprep.subr.mxu0 %v486
    %890 = vmatpush1.msra.mxu0 %v485
    %891 = vmatprep.subr.mxu0 %v490
    %892 = vmatpush1.msra.mxu0 %v489
    %893 = vmatprep.mubr.f32.mxu0 %v677
    %894 = vmatmul.mubr.f32.gmra.mrb[0].mxu0 %v669
    %v895 = vpop.f32.mrb[0].mxu0
    %v896 = vadd.f32 %v825, %v895
    %v897 = vpop.f32.mrb[0].mxu0
    %v898 = vadd.f32 %v827, %v897
    %899 = vdwg.mxu0
    %900 = vmatprep.subr.mxu0 %v494
    %901 = vmatpush1.msra.mxu0 %v493
    %902 = vmatprep.subr.mxu0 %v498
    %903 = vmatpush1.msra.mxu0 %v497
    %904 = vmatprep.subr.mxu0 %v502
    %905 = vmatpush1.msra.mxu0 %v501
    %906 = vmatprep.subr.mxu0 %v506
    %907 = vmatpush1.msra.mxu0 %v505
    %908 = vmatprep.subr.mxu0 %v510
    %909 = vmatpush1.msra.mxu0 %v509
    %910 = vmatprep.subr.mxu0 %v514
    %911 = vmatpush1.msra.mxu0 %v513
    %912 = vmatprep.subr.mxu0 %v518
    %913 = vmatpush1.msra.mxu0 %v517
    %914 = vmatprep.subr.mxu0 %v522
    %915 = vmatpush1.msra.mxu0 %v521
    %916 = vmatprep.subr.mxu0 %v526
    %917 = vmatpush1.msra.mxu0 %v525
    %918 = vmatprep.subr.mxu0 %v530
    %919 = vmatpush1.msra.mxu0 %v529
    %920 = vmatprep.subr.mxu0 %v534
    %921 = vmatpush1.msra.mxu0 %v533
    %922 = vmatprep.subr.mxu0 %v538
    %923 = vmatpush1.msra.mxu0 %v537
    %924 = vmatprep.subr.mxu0 %v542
    %925 = vmatpush1.msra.mxu0 %v541
    %926 = vmatprep.subr.mxu0 %v546
    %927 = vmatpush1.msra.mxu0 %v545
    %928 = vmatprep.subr.mxu0 %v550
    %929 = vmatpush1.msra.mxu0 %v549
    %930 = vmatprep.subr.mxu0 %v554
    %931 = vmatpush1.msra.mxu0 %v553
    %932 = vmatprep.subr.mxu0 %v558
    %933 = vmatpush1.msra.mxu0 %v557
    %934 = vmatprep.subr.mxu0 %v562
    %935 = vmatpush1.msra.mxu0 %v561
    %936 = vmatprep.subr.mxu0 %v566
    %937 = vmatpush1.msra.mxu0 %v565
    %938 = vmatprep.subr.mxu0 %v570
    %939 = vmatpush1.msra.mxu0 %v569
    %940 = vmatprep.subr.mxu0 %v574
    %941 = vmatpush1.msra.mxu0 %v573
    %942 = vmatprep.subr.mxu0 %v578
    %943 = vmatpush1.msra.mxu0 %v577
    %944 = vmatprep.subr.mxu0 %v582
    %945 = vmatpush1.msra.mxu0 %v581
    %946 = vmatprep.subr.mxu0 %v586
    %947 = vmatpush1.msra.mxu0 %v585
    %948 = vmatprep.subr.mxu0 %v590
    %949 = vmatpush1.msra.mxu0 %v589
    %950 = vmatprep.subr.mxu0 %v594
    %951 = vmatpush1.msra.mxu0 %v593
    %952 = vmatprep.subr.mxu0 %v598
    %953 = vmatpush1.msra.mxu0 %v597
    %954 = vmatprep.subr.mxu0 %v602
    %955 = vmatpush1.msra.mxu0 %v601
    %956 = vmatprep.subr.mxu0 %v606
    %957 = vmatpush1.msra.mxu0 %v605
    %958 = vmatprep.subr.mxu0 %v610
    %959 = vmatpush1.msra.mxu0 %v609
    %960 = vmatprep.subr.mxu0 %v614
    %961 = vmatpush1.msra.mxu0 %v613
    %962 = vmatprep.subr.mxu0 %v618
    %963 = vmatpush1.msra.mxu0 %v617
    %964 = vmatprep.mubr.f32.mxu0 %v678
    %965 = vmatmul.mubr.f32.gmra.mrb[0].mxu0 %v676
    %v966 = vpop.f32.mrb[0].mxu0
    %v967 = vadd.f32 %v896, %v966
    %v968 = vpop.f32.mrb[0].mxu0
    %v969 = vadd.f32 %v898, %v968
    %970 = vdwg.mxu0
    %971 = vmatprep.subr.mxu0 %v112
    %972 = vmatpush1.msra.mxu0 %v111
    %973 = vmatprep.subr.mxu0 %v116
    %974 = vmatpush1.msra.mxu0 %v115
    %975 = vmatprep.subr.mxu0 %v120
    %976 = vmatpush1.msra.mxu0 %v119
    %977 = vmatprep.subr.mxu0 %v124
    %978 = vmatpush1.msra.mxu0 %v123
    %979 = vmatprep.subr.mxu0 %v128
    %980 = vmatpush1.msra.mxu0 %v127
    %981 = vmatprep.subr.mxu0 %v132
    %982 = vmatpush1.msra.mxu0 %v131
    %983 = vmatprep.subr.mxu0 %v136
    %984 = vmatpush1.msra.mxu0 %v135
    %985 = vmatprep.subr.mxu0 %v140
    %986 = vmatpush1.msra.mxu0 %v139
    %987 = vmatprep.subr.mxu0 %v144
    %988 = vmatpush1.msra.mxu0 %v143
    %989 = vmatprep.subr.mxu0 %v148
    %990 = vmatpush1.msra.mxu0 %v147
    %991 = vmatprep.subr.mxu0 %v152
    %992 = vmatpush1.msra.mxu0 %v151
    %993 = vmatprep.subr.mxu0 %v156
    %994 = vmatpush1.msra.mxu0 %v155
    %995 = vmatprep.subr.mxu0 %v160
    %996 = vmatpush1.msra.mxu0 %v159
    %997 = vmatprep.subr.mxu0 %v164
    %998 = vmatpush1.msra.mxu0 %v163
    %999 = vmatprep.subr.mxu0 %v168
    %1000 = vmatpush1.msra.mxu0 %v167
    %1001 = vmatprep.subr.mxu0 %v172
    %1002 = vmatpush1.msra.mxu0 %v171
    %1003 = vmatprep.subr.mxu0 %v176
    %1004 = vmatpush1.msra.mxu0 %v175
    %1005 = vmatprep.subr.mxu0 %v180
    %1006 = vmatpush1.msra.mxu0 %v179
    %1007 = vmatprep.subr.mxu0 %v184
    %1008 = vmatpush1.msra.mxu0 %v183
    %1009 = vmatprep.subr.mxu0 %v188
    %1010 = vmatpush1.msra.mxu0 %v187
    %1011 = vmatprep.subr.mxu0 %v192
    %1012 = vmatpush1.msra.mxu0 %v191
    %1013 = vmatprep.subr.mxu0 %v196
    %1014 = vmatpush1.msra.mxu0 %v195
    %1015 = vmatprep.subr.mxu0 %v200
    %1016 = vmatpush1.msra.mxu0 %v199
    %1017 = vmatprep.subr.mxu0 %v204
    %1018 = vmatpush1.msra.mxu0 %v203
    %1019 = vmatprep.subr.mxu0 %v208
    %1020 = vmatpush1.msra.mxu0 %v207
    %1021 = vmatprep.subr.mxu0 %v212
    %1022 = vmatpush1.msra.mxu0 %v211
    %1023 = vmatprep.subr.mxu0 %v216
    %1024 = vmatpush1.msra.mxu0 %v215
    %1025 = vmatprep.subr.mxu0 %v220
    %1026 = vmatpush1.msra.mxu0 %v219
    %1027 = vmatprep.subr.mxu0 %v224
    %1028 = vmatpush1.msra.mxu0 %v223
    %1029 = vmatprep.subr.mxu0 %v228
    %1030 = vmatpush1.msra.mxu0 %v227
    %1031 = vmatprep.subr.mxu0 %v232
    %1032 = vmatpush1.msra.mxu0 %v231
    %1033 = vmatprep.subr.mxu0 %v236
    %1034 = vmatpush1.msra.mxu0 %v235
    %1035 = vmatprep.mubr.f32.mxu0 %v660
    %1036 = vmatmul.mubr.f32.gmra.mrb[0].mxu0 %v652
    %v1037 = vpop.f32.mrb[0].mxu0
    %v1038 = vadd.f32 %v634, %v1037
    %v1039 = vpop.f32.mrb[0].mxu0
    %v1040 = vadd.f32 %v638, %v1039
    %1041 = vdwg.mxu0
    %1042 = vmatprep.subr.mxu0 %v240
    %1043 = vmatpush1.msra.mxu0 %v239
    %1044 = vmatprep.subr.mxu0 %v244
    %1045 = vmatpush1.msra.mxu0 %v243
    %1046 = vmatprep.subr.mxu0 %v248
    %1047 = vmatpush1.msra.mxu0 %v247
    %1048 = vmatprep.subr.mxu0 %v252
    %1049 = vmatpush1.msra.mxu0 %v251
    %1050 = vmatprep.subr.mxu0 %v256
    %1051 = vmatpush1.msra.mxu0 %v255
    %1052 = vmatprep.subr.mxu0 %v260
    %1053 = vmatpush1.msra.mxu0 %v259
    %1054 = vmatprep.subr.mxu0 %v264
    %1055 = vmatpush1.msra.mxu0 %v263
    %1056 = vmatprep.subr.mxu0 %v268
    %1057 = vmatpush1.msra.mxu0 %v267
    %1058 = vmatprep.subr.mxu0 %v272
    %1059 = vmatpush1.msra.mxu0 %v271
    %1060 = vmatprep.subr.mxu0 %v276
    %1061 = vmatpush1.msra.mxu0 %v275
    %1062 = vmatprep.subr.mxu0 %v280
    %1063 = vmatpush1.msra.mxu0 %v279
    %1064 = vmatprep.subr.mxu0 %v284
    %1065 = vmatpush1.msra.mxu0 %v283
    %1066 = vmatprep.subr.mxu0 %v288
    %1067 = vmatpush1.msra.mxu0 %v287
    %1068 = vmatprep.subr.mxu0 %v292
    %1069 = vmatpush1.msra.mxu0 %v291
    %1070 = vmatprep.subr.mxu0 %v296
    %1071 = vmatpush1.msra.mxu0 %v295
    %1072 = vmatprep.subr.mxu0 %v300
    %1073 = vmatpush1.msra.mxu0 %v299
    %1074 = vmatprep.subr.mxu0 %v304
    %1075 = vmatpush1.msra.mxu0 %v303
    %1076 = vmatprep.subr.mxu0 %v308
    %1077 = vmatpush1.msra.mxu0 %v307
    %1078 = vmatprep.subr.mxu0 %v312
    %1079 = vmatpush1.msra.mxu0 %v311
    %1080 = vmatprep.subr.mxu0 %v316
    %1081 = vmatpush1.msra.mxu0 %v315
    %1082 = vmatprep.subr.mxu0 %v320
    %1083 = vmatpush1.msra.mxu0 %v319
    %1084 = vmatprep.subr.mxu0 %v324
    %1085 = vmatpush1.msra.mxu0 %v323
    %1086 = vmatprep.subr.mxu0 %v328
    %1087 = vmatpush1.msra.mxu0 %v327
    %1088 = vmatprep.subr.mxu0 %v332
    %1089 = vmatpush1.msra.mxu0 %v331
    %1090 = vmatprep.subr.mxu0 %v336
    %1091 = vmatpush1.msra.mxu0 %v335
    %1092 = vmatprep.subr.mxu0 %v340
    %1093 = vmatpush1.msra.mxu0 %v339
    %1094 = vmatprep.subr.mxu0 %v344
    %1095 = vmatpush1.msra.mxu0 %v343
    %1096 = vmatprep.subr.mxu0 %v348
    %1097 = vmatpush1.msra.mxu0 %v347
    %1098 = vmatprep.subr.mxu0 %v352
    %1099 = vmatpush1.msra.mxu0 %v351
    %1100 = vmatprep.subr.mxu0 %v356
    %1101 = vmatpush1.msra.mxu0 %v355
    %1102 = vmatprep.subr.mxu0 %v360
    %1103 = vmatpush1.msra.mxu0 %v359
    %1104 = vmatprep.subr.mxu0 %v364
    %1105 = vmatpush1.msra.mxu0 %v363
    %1106 = vmatprep.mubr.f32.mxu0 %v661
    %1107 = vmatmul.mubr.f32.gmra.mrb[0].mxu0 %v659
    %v1108 = vpop.f32.mrb[0].mxu0
    %v1109 = vadd.f32 %v1038, %v1108
    %v1110 = vpop.f32.mrb[0].mxu0
    %v1111 = vadd.f32 %v1040, %v1110
    %1112 = vdwg.mxu0
    %1113 = vmatprep.subr.mxu0 %v368
    %1114 = vmatpush1.msra.mxu0 %v367
    %1115 = vmatprep.subr.mxu0 %v372
    %1116 = vmatpush1.msra.mxu0 %v371
    %1117 = vmatprep.subr.mxu0 %v376
    %1118 = vmatpush1.msra.mxu0 %v375
    %1119 = vmatprep.subr.mxu0 %v380
    %1120 = vmatpush1.msra.mxu0 %v379
    %1121 = vmatprep.subr.mxu0 %v384
    %1122 = vmatpush1.msra.mxu0 %v383
    %1123 = vmatprep.subr.mxu0 %v388
    %1124 = vmatpush1.msra.mxu0 %v387
    %1125 = vmatprep.subr.mxu0 %v392
    %1126 = vmatpush1.msra.mxu0 %v391
    %1127 = vmatprep.subr.mxu0 %v396
    %1128 = vmatpush1.msra.mxu0 %v395
    %1129 = vmatprep.subr.mxu0 %v400
    %1130 = vmatpush1.msra.mxu0 %v399
    %1131 = vmatprep.subr.mxu0 %v404
    %1132 = vmatpush1.msra.mxu0 %v403
    %1133 = vmatprep.subr.mxu0 %v408
    %1134 = vmatpush1.msra.mxu0 %v407
    %1135 = vmatprep.subr.mxu0 %v412
    %1136 = vmatpush1.msra.mxu0 %v411
    %1137 = vmatprep.subr.mxu0 %v416
    %1138 = vmatpush1.msra.mxu0 %v415
    %1139 = vmatprep.subr.mxu0 %v420
    %1140 = vmatpush1.msra.mxu0 %v419
    %1141 = vmatprep.subr.mxu0 %v424
    %1142 = vmatpush1.msra.mxu0 %v423
    %1143 = vmatprep.subr.mxu0 %v428
    %1144 = vmatpush1.msra.mxu0 %v427
    %1145 = vmatprep.subr.mxu0 %v432
    %1146 = vmatpush1.msra.mxu0 %v431
    %1147 = vmatprep.subr.mxu0 %v436
    %1148 = vmatpush1.msra.mxu0 %v435
    %1149 = vmatprep.subr.mxu0 %v440
    %1150 = vmatpush1.msra.mxu0 %v439
    %1151 = vmatprep.subr.mxu0 %v444
    %1152 = vmatpush1.msra.mxu0 %v443
    %1153 = vmatprep.subr.mxu0 %v448
    %1154 = vmatpush1.msra.mxu0 %v447
    %1155 = vmatprep.subr.mxu0 %v452
    %1156 = vmatpush1.msra.mxu0 %v451
    %1157 = vmatprep.subr.mxu0 %v456
    %1158 = vmatpush1.msra.mxu0 %v455
    %1159 = vmatprep.subr.mxu0 %v460
    %1160 = vmatpush1.msra.mxu0 %v459
    %1161 = vmatprep.subr.mxu0 %v464
    %1162 = vmatpush1.msra.mxu0 %v463
    %1163 = vmatprep.subr.mxu0 %v468
    %1164 = vmatpush1.msra.mxu0 %v467
    %1165 = vmatprep.subr.mxu0 %v472
    %1166 = vmatpush1.msra.mxu0 %v471
    %1167 = vmatprep.subr.mxu0 %v476
    %1168 = vmatpush1.msra.mxu0 %v475
    %1169 = vmatprep.subr.mxu0 %v480
    %1170 = vmatpush1.msra.mxu0 %v479
    %1171 = vmatprep.subr.mxu0 %v484
    %1172 = vmatpush1.msra.mxu0 %v483
    %1173 = vmatprep.subr.mxu0 %v488
    %1174 = vmatpush1.msra.mxu0 %v487
    %1175 = vmatprep.subr.mxu0 %v492
    %1176 = vmatpush1.msra.mxu0 %v491
    %1177 = vmatprep.mubr.f32.mxu0 %v677
    %1178 = vmatmul.mubr.f32.gmra.mrb[0].mxu0 %v669
    %v1179 = vpop.f32.mrb[0].mxu0
    %v1180 = vadd.f32 %v1109, %v1179
    %v1181 = vpop.f32.mrb[0].mxu0
    %v1182 = vadd.f32 %v1111, %v1181
    %1183 = vdwg.mxu0
    %1184 = vmatprep.subr.mxu0 %v496
    %1185 = vmatpush1.msra.mxu0 %v495
    %1186 = vmatprep.subr.mxu0 %v500
    %1187 = vmatpush1.msra.mxu0 %v499
    %1188 = vmatprep.subr.mxu0 %v504
    %1189 = vmatpush1.msra.mxu0 %v503
    %1190 = vmatprep.subr.mxu0 %v508
    %1191 = vmatpush1.msra.mxu0 %v507
    %1192 = vmatprep.subr.mxu0 %v512
    %1193 = vmatpush1.msra.mxu0 %v511
    %1194 = vmatprep.subr.mxu0 %v516
    %1195 = vmatpush1.msra.mxu0 %v515
    %1196 = vmatprep.subr.mxu0 %v520
    %1197 = vmatpush1.msra.mxu0 %v519
    %1198 = vmatprep.subr.mxu0 %v524
    %1199 = vmatpush1.msra.mxu0 %v523
    %1200 = vmatprep.subr.mxu0 %v528
    %1201 = vmatpush1.msra.mxu0 %v527
    %1202 = vmatprep.subr.mxu0 %v532
    %1203 = vmatpush1.msra.mxu0 %v531
    %1204 = vmatprep.subr.mxu0 %v536
    %1205 = vmatpush1.msra.mxu0 %v535
    %1206 = vmatprep.subr.mxu0 %v540
    %1207 = vmatpush1.msra.mxu0 %v539
    %1208 = vmatprep.subr.mxu0 %v544
    %1209 = vmatpush1.msra.mxu0 %v543
    %1210 = vmatprep.subr.mxu0 %v548
    %1211 = vmatpush1.msra.mxu0 %v547
    %1212 = vmatprep.subr.mxu0 %v552
    %1213 = vmatpush1.msra.mxu0 %v551
    %1214 = vmatprep.subr.mxu0 %v556
    %1215 = vmatpush1.msra.mxu0 %v555
    %1216 = vmatprep.subr.mxu0 %v560
    %1217 = vmatpush1.msra.mxu0 %v559
    %1218 = vmatprep.subr.mxu0 %v564
    %1219 = vmatpush1.msra.mxu0 %v563
    %1220 = vmatprep.subr.mxu0 %v568
    %1221 = vmatpush1.msra.mxu0 %v567
    %1222 = vmatprep.subr.mxu0 %v572
    %1223 = vmatpush1.msra.mxu0 %v571
    %1224 = vmatprep.subr.mxu0 %v576
    %1225 = vmatpush1.msra.mxu0 %v575
    %1226 = vmatprep.subr.mxu0 %v580
    %1227 = vmatpush1.msra.mxu0 %v579
    %1228 = vmatprep.subr.mxu0 %v584
    %1229 = vmatpush1.msra.mxu0 %v583
    %1230 = vmatprep.subr.mxu0 %v588
    %1231 = vmatpush1.msra.mxu0 %v587
    %1232 = vmatprep.subr.mxu0 %v592
    %1233 = vmatpush1.msra.mxu0 %v591
    %1234 = vmatprep.subr.mxu0 %v596
    %1235 = vmatpush1.msra.mxu0 %v595
    %1236 = vmatprep.subr.mxu0 %v600
    %1237 = vmatpush1.msra.mxu0 %v599
    %1238 = vmatprep.subr.mxu0 %v604
    %1239 = vmatpush1.msra.mxu0 %v603
    %1240 = vmatprep.subr.mxu0 %v608
    %1241 = vmatpush1.msra.mxu0 %v607
    %1242 = vmatprep.subr.mxu0 %v612
    %1243 = vmatpush1.msra.mxu0 %v611
    %1244 = vmatprep.subr.mxu0 %v616
    %1245 = vmatpush1.msra.mxu0 %v615
    %1246 = vmatprep.subr.mxu0 %v620
    %1247 = vmatpush1.msra.mxu0 %v619
    %1248 = vmatprep.mubr.f32.mxu0 %v678
    %1249 = vmatmul.mubr.f32.gmra.mrb[0].mxu0 %v676
    %v1250 = vpop.f32.mrb[0].mxu0
    %v1251 = vadd.f32 %v1180, %v1250
    %v1252 = vpop.f32.mrb[0].mxu0
    %v1253 = vadd.f32 %v1182, %v1252
    %1254 = vdwg.mxu0
    %v1255 = vmax.f32 %v967, 0.0
    %v1256 = vmax.f32 %v969, 0.0
    %v1257 = vmax.f32 %v1251, 0.0
    %v1258 = vmax.f32 %v1253, 0.0
    %v1259 = vld [vmem:[#allocation7] sm:$0xff]
    %v1260 = vld [vmem:[#allocation7 + $0x8] sm:$0xff]
    %v1261 = vld [vmem:[#allocation7 + $0x10] sm:$0xff]
    %v1262 = vld [vmem:[#allocation7 + $0x18] sm:$0xff]
    %v1263 = vld [vmem:[#allocation7 + $0x20] sm:$0xff]
    %v1264 = vld [vmem:[#allocation7 + $0x28] sm:$0xff]
    %v1265 = vld [vmem:[#allocation7 + $0x30] sm:$0xff]
    %v1266 = vld [vmem:[#allocation7 + $0x38] sm:$0xff]
    %v1267 = vld [vmem:[#allocation7 + $0x40] sm:$0xff]
    %v1268 = vld [vmem:[#allocation7 + $0x48] sm:$0xff]
    %v1269 = vld [vmem:[#allocation7 + $0x50] sm:$0xff]
    %v1270 = vld [vmem:[#allocation7 + $0x58] sm:$0xff]
    %v1271 = vld [vmem:[#allocation7 + $0x60] sm:$0xff]
    %v1272 = vld [vmem:[#allocation7 + $0x68] sm:$0xff]
    %v1273 = vld [vmem:[#allocation7 + $0x70] sm:$0xff]
    %v1274 = vld [vmem:[#allocation7 + $0x78] sm:$0xff]
    %v1275 = vld [vmem:[#allocation7 + $0x80] sm:$0xff]
    %v1276 = vld [vmem:[#allocation7 + $0x88] sm:$0xff]
    %v1277 = vld [vmem:[#allocation7 + $0x90] sm:$0xff]
    %v1278 = vld [vmem:[#allocation7 + $0x98] sm:$0xff]
    %v1279 = vld [vmem:[#allocation7 + $0xa0] sm:$0xff]
    %v1280 = vld [vmem:[#allocation7 + $0xa8] sm:$0xff]
    %v1281 = vld [vmem:[#allocation7 + $0xb0] sm:$0xff]
    %v1282 = vld [vmem:[#allocation7 + $0xb8] sm:$0xff]
    %v1283 = vld [vmem:[#allocation7 + $0xc0] sm:$0xff]
    %v1284 = vld [vmem:[#allocation7 + $0xc8] sm:$0xff]
    %v1285 = vld [vmem:[#allocation7 + $0xd0] sm:$0xff]
    %v1286 = vld [vmem:[#allocation7 + $0xd8] sm:$0xff]
    %v1287 = vld [vmem:[#allocation7 + $0xe0] sm:$0xff]
    %v1288 = vld [vmem:[#allocation7 + $0xe8] sm:$0xff]
    %v1289 = vld [vmem:[#allocation7 + $0xf0] sm:$0xff]
    %v1290 = vld [vmem:[#allocation7 + $0xf8] sm:$0xff]
    %v1291 = vld [vmem:[#allocation7 + $0x100] sm:$0xff]
    %v1292 = vld [vmem:[#allocation7 + $0x108] sm:$0xff]
    %v1293 = vld [vmem:[#allocation7 + $0x110] sm:$0xff]
    %v1294 = vld [vmem:[#allocation7 + $0x118] sm:$0xff]
    %v1295 = vld [vmem:[#allocation7 + $0x120] sm:$0xff]
    %v1296 = vld [vmem:[#allocation7 + $0x128] sm:$0xff]
    %v1297 = vld [vmem:[#allocation7 + $0x130] sm:$0xff]
    %v1298 = vld [vmem:[#allocation7 + $0x138] sm:$0xff]
    %v1299 = vld [vmem:[#allocation7 + $0x140] sm:$0xff]
    %v1300 = vld [vmem:[#allocation7 + $0x148] sm:$0xff]
    %v1301 = vld [vmem:[#allocation7 + $0x150] sm:$0xff]
    %v1302 = vld [vmem:[#allocation7 + $0x158] sm:$0xff]
    %v1303 = vld [vmem:[#allocation7 + $0x160] sm:$0xff]
    %v1304 = vld [vmem:[#allocation7 + $0x168] sm:$0xff]
    %v1305 = vld [vmem:[#allocation7 + $0x170] sm:$0xff]
    %v1306 = vld [vmem:[#allocation7 + $0x178] sm:$0xff]
    %v1307 = vld [vmem:[#allocation7 + $0x180] sm:$0xff]
    %v1308 = vld [vmem:[#allocation7 + $0x188] sm:$0xff]
    %v1309 = vld [vmem:[#allocation7 + $0x190] sm:$0xff]
    %v1310 = vld [vmem:[#allocation7 + $0x198] sm:$0xff]
    %v1311 = vld [vmem:[#allocation7 + $0x1a0] sm:$0xff]
    %v1312 = vld [vmem:[#allocation7 + $0x1a8] sm:$0xff]
    %v1313 = vld [vmem:[#allocation7 + $0x1b0] sm:$0xff]
    %v1314 = vld [vmem:[#allocation7 + $0x1b8] sm:$0xff]
    %v1315 = vld [vmem:[#allocation7 + $0x1c0] sm:$0xff]
    %v1316 = vld [vmem:[#allocation7 + $0x1c8] sm:$0xff]
    %v1317 = vld [vmem:[#allocation7 + $0x1d0] sm:$0xff]
    %v1318 = vld [vmem:[#allocation7 + $0x1d8] sm:$0xff]
    %v1319 = vld [vmem:[#allocation7 + $0x1e0] sm:$0xff]
    %v1320 = vld [vmem:[#allocation7 + $0x1e8] sm:$0xff]
    %v1321 = vld [vmem:[#allocation7 + $0x1f0] sm:$0xff]
    %v1322 = vld [vmem:[#allocation7 + $0x1f8] sm:$0xff]
    %v1323 = vld [vmem:[#allocation7 + $0x200] sm:$0xff]
    %v1324 = vld [vmem:[#allocation7 + $0x208] sm:$0xff]
    %v1325 = vld [vmem:[#allocation7 + $0x210] sm:$0xff]
    %v1326 = vld [vmem:[#allocation7 + $0x218] sm:$0xff]
    %v1327 = vld [vmem:[#allocation7 + $0x220] sm:$0xff]
    %v1328 = vld [vmem:[#allocation7 + $0x228] sm:$0xff]
    %v1329 = vld [vmem:[#allocation7 + $0x230] sm:$0xff]
    %v1330 = vld [vmem:[#allocation7 + $0x238] sm:$0xff]
    %v1331 = vld [vmem:[#allocation7 + $0x240] sm:$0xff]
    %v1332 = vld [vmem:[#allocation7 + $0x248] sm:$0xff]
    %v1333 = vld [vmem:[#allocation7 + $0x250] sm:$0xff]
    %v1334 = vld [vmem:[#allocation7 + $0x258] sm:$0xff]
    %v1335 = vld [vmem:[#allocation7 + $0x260] sm:$0xff]
    %v1336 = vld [vmem:[#allocation7 + $0x268] sm:$0xff]
    %v1337 = vld [vmem:[#allocation7 + $0x270] sm:$0xff]
    %v1338 = vld [vmem:[#allocation7 + $0x278] sm:$0xff]
    %v1339 = vld [vmem:[#allocation7 + $0x280] sm:$0xff]
    %v1340 = vld [vmem:[#allocation7 + $0x288] sm:$0xff]
    %v1341 = vld [vmem:[#allocation7 + $0x290] sm:$0xff]
    %v1342 = vld [vmem:[#allocation7 + $0x298] sm:$0xff]
    %v1343 = vld [vmem:[#allocation7 + $0x2a0] sm:$0xff]
    %v1344 = vld [vmem:[#allocation7 + $0x2a8] sm:$0xff]
    %v1345 = vld [vmem:[#allocation7 + $0x2b0] sm:$0xff]
    %v1346 = vld [vmem:[#allocation7 + $0x2b8] sm:$0xff]
    %v1347 = vld [vmem:[#allocation7 + $0x2c0] sm:$0xff]
    %v1348 = vld [vmem:[#allocation7 + $0x2c8] sm:$0xff]
    %v1349 = vld [vmem:[#allocation7 + $0x2d0] sm:$0xff]
    %v1350 = vld [vmem:[#allocation7 + $0x2d8] sm:$0xff]
    %v1351 = vld [vmem:[#allocation7 + $0x2e0] sm:$0xff]
    %v1352 = vld [vmem:[#allocation7 + $0x2e8] sm:$0xff]
    %v1353 = vld [vmem:[#allocation7 + $0x2f0] sm:$0xff]
    %v1354 = vld [vmem:[#allocation7 + $0x2f8] sm:$0xff]
    %v1355 = vld [vmem:[#allocation7 + $0x300] sm:$0xff]
    %v1356 = vld [vmem:[#allocation7 + $0x308] sm:$0xff]
    %v1357 = vld [vmem:[#allocation7 + $0x310] sm:$0xff]
    %v1358 = vld [vmem:[#allocation7 + $0x318] sm:$0xff]
    %v1359 = vld [vmem:[#allocation7 + $0x320] sm:$0xff]
    %v1360 = vld [vmem:[#allocation7 + $0x328] sm:$0xff]
    %v1361 = vld [vmem:[#allocation7 + $0x330] sm:$0xff]
    %v1362 = vld [vmem:[#allocation7 + $0x338] sm:$0xff]
    %v1363 = vld [vmem:[#allocation7 + $0x340] sm:$0xff]
    %v1364 = vld [vmem:[#allocation7 + $0x348] sm:$0xff]
    %v1365 = vld [vmem:[#allocation7 + $0x350] sm:$0xff]
    %v1366 = vld [vmem:[#allocation7 + $0x358] sm:$0xff]
    %v1367 = vld [vmem:[#allocation7 + $0x360] sm:$0xff]
    %v1368 = vld [vmem:[#allocation7 + $0x368] sm:$0xff]
    %v1369 = vld [vmem:[#allocation7 + $0x370] sm:$0xff]
    %v1370 = vld [vmem:[#allocation7 + $0x378] sm:$0xff]
    %v1371 = vld [vmem:[#allocation7 + $0x380] sm:$0xff]
    %v1372 = vld [vmem:[#allocation7 + $0x388] sm:$0xff]
    %v1373 = vld [vmem:[#allocation7 + $0x390] sm:$0xff]
    %v1374 = vld [vmem:[#allocation7 + $0x398] sm:$0xff]
    %v1375 = vld [vmem:[#allocation7 + $0x3a0] sm:$0xff]
    %v1376 = vld [vmem:[#allocation7 + $0x3a8] sm:$0xff]
    %v1377 = vld [vmem:[#allocation7 + $0x3b0] sm:$0xff]
    %v1378 = vld [vmem:[#allocation7 + $0x3b8] sm:$0xff]
    %v1379 = vld [vmem:[#allocation7 + $0x3c0] sm:$0xff]
    %v1380 = vld [vmem:[#allocation7 + $0x3c8] sm:$0xff]
    %v1381 = vld [vmem:[#allocation7 + $0x3d0] sm:$0xff]
    %v1382 = vld [vmem:[#allocation7 + $0x3d8] sm:$0xff]
    %v1383 = vld [vmem:[#allocation7 + $0x3e0] sm:$0xff]
    %v1384 = vld [vmem:[#allocation7 + $0x3e8] sm:$0xff]
    %v1385 = vld [vmem:[#allocation7 + $0x3f0] sm:$0xff]
    %v1386 = vld [vmem:[#allocation7 + $0x3f8] sm:$0xff]
    %v1387 = vld [vmem:[#allocation8] sm:$0x3]
    %v1389 = vlaneseq
    %v1390 = vshrl.u32 %v1389, 7
    %v1391 = vsub.s32 0, %v1390
    %v1392 = vrot.slane %v1387, %v1391
    %v1393 = vlaneseq
    %v1394 = vshrl.u32 %v1393, 7
    %v1395 = vsub.s32 1, %v1394
    %v1396 = vrot.slane %v1387, %v1395
    %1399 = vmatprep.subr.mxu0 %v1260
    %1400 = vmatpush1.msra.mxu0 %v1259
    %1401 = vmatprep.subr.mxu0 %v1262
    %1402 = vmatpush1.msra.mxu0 %v1261
    %1403 = vmatprep.subr.mxu0 %v1264
    %1404 = vmatpush1.msra.mxu0 %v1263
    %1405 = vmatprep.subr.mxu0 %v1266
    %1406 = vmatpush1.msra.mxu0 %v1265
    %1407 = vmatprep.subr.mxu0 %v1268
    %1408 = vmatpush1.msra.mxu0 %v1267
    %1409 = vmatprep.subr.mxu0 %v1270
    %1410 = vmatpush1.msra.mxu0 %v1269
    %1411 = vmatprep.subr.mxu0 %v1272
    %1412 = vmatpush1.msra.mxu0 %v1271
    %1413 = vmatprep.subr.mxu0 %v1274
    %1414 = vmatpush1.msra.mxu0 %v1273
    %1415 = vmatprep.subr.mxu0 %v1276
    %1416 = vmatpush1.msra.mxu0 %v1275
    %1417 = vmatprep.subr.mxu0 %v1278
    %1418 = vmatpush1.msra.mxu0 %v1277
    %1419 = vmatprep.subr.mxu0 %v1280
    %1420 = vmatpush1.msra.mxu0 %v1279
    %1421 = vmatprep.subr.mxu0 %v1282
    %1422 = vmatpush1.msra.mxu0 %v1281
    %1423 = vmatprep.subr.mxu0 %v1284
    %1424 = vmatpush1.msra.mxu0 %v1283
    %1425 = vmatprep.subr.mxu0 %v1286
    %1426 = vmatpush1.msra.mxu0 %v1285
    %1427 = vmatprep.subr.mxu0 %v1288
    %1428 = vmatpush1.msra.mxu0 %v1287
    %1429 = vmatprep.subr.mxu0 %v1290
    %1430 = vmatpush1.msra.mxu0 %v1289
    %1431 = vmatprep.subr.mxu0 %v1292
    %1432 = vmatpush1.msra.mxu0 %v1291
    %1433 = vmatprep.subr.mxu0 %v1294
    %1434 = vmatpush1.msra.mxu0 %v1293
    %1435 = vmatprep.subr.mxu0 %v1296
    %1436 = vmatpush1.msra.mxu0 %v1295
    %1437 = vmatprep.subr.mxu0 %v1298
    %1438 = vmatpush1.msra.mxu0 %v1297
    %1439 = vmatprep.subr.mxu0 %v1300
    %1440 = vmatpush1.msra.mxu0 %v1299
    %1441 = vmatprep.subr.mxu0 %v1302
    %1442 = vmatpush1.msra.mxu0 %v1301
    %1443 = vmatprep.subr.mxu0 %v1304
    %1444 = vmatpush1.msra.mxu0 %v1303
    %1445 = vmatprep.subr.mxu0 %v1306
    %1446 = vmatpush1.msra.mxu0 %v1305
    %1447 = vmatprep.subr.mxu0 %v1308
    %1448 = vmatpush1.msra.mxu0 %v1307
    %1449 = vmatprep.subr.mxu0 %v1310
    %1450 = vmatpush1.msra.mxu0 %v1309
    %1451 = vmatprep.subr.mxu0 %v1312
    %1452 = vmatpush1.msra.mxu0 %v1311
    %1453 = vmatprep.subr.mxu0 %v1314
    %1454 = vmatpush1.msra.mxu0 %v1313
    %1455 = vmatprep.subr.mxu0 %v1316
    %1456 = vmatpush1.msra.mxu0 %v1315
    %1457 = vmatprep.subr.mxu0 %v1318
    %1458 = vmatpush1.msra.mxu0 %v1317
    %1459 = vmatprep.subr.mxu0 %v1320
    %1460 = vmatpush1.msra.mxu0 %v1319
    %1461 = vmatprep.subr.mxu0 %v1322
    %1462 = vmatpush1.msra.mxu0 %v1321
    %1463 = vmatprep.mubr.f32.mxu0 %v1256
    %1464 = vmatmul.mubr.f32.gmra.mrb[0].mxu0 %v1255
    %v1465 = vpop.f32.mrb[0].mxu0
    %v1466 = vadd.f32 %v1392, %v1465
    %v1467 = vpop.f32.mrb[0].mxu0
    %v1468 = vadd.f32 %v1396, %v1467
    %1469 = vdwg.mxu0
    %1470 = vmatprep.subr.mxu0 %v1324
    %1471 = vmatpush1.msra.mxu0 %v1323
    %1472 = vmatprep.subr.mxu0 %v1326
    %1473 = vmatpush1.msra.mxu0 %v1325
    %1474 = vmatprep.subr.mxu0 %v1328
    %1475 = vmatpush1.msra.mxu0 %v1327
    %1476 = vmatprep.subr.mxu0 %v1330
    %1477 = vmatpush1.msra.mxu0 %v1329
    %1478 = vmatprep.subr.mxu0 %v1332
    %1479 = vmatpush1.msra.mxu0 %v1331
    %1480 = vmatprep.subr.mxu0 %v1334
    %1481 = vmatpush1.msra.mxu0 %v1333
    %1482 = vmatprep.subr.mxu0 %v1336
    %1483 = vmatpush1.msra.mxu0 %v1335
    %1484 = vmatprep.subr.mxu0 %v1338
    %1485 = vmatpush1.msra.mxu0 %v1337
    %1486 = vmatprep.subr.mxu0 %v1340
    %1487 = vmatpush1.msra.mxu0 %v1339
    %1488 = vmatprep.subr.mxu0 %v1342
    %1489 = vmatpush1.msra.mxu0 %v1341
    %1490 = vmatprep.subr.mxu0 %v1344
    %1491 = vmatpush1.msra.mxu0 %v1343
    %1492 = vmatprep.subr.mxu0 %v1346
    %1493 = vmatpush1.msra.mxu0 %v1345
    %1494 = vmatprep.subr.mxu0 %v1348
    %1495 = vmatpush1.msra.mxu0 %v1347
    %1496 = vmatprep.subr.mxu0 %v1350
    %1497 = vmatpush1.msra.mxu0 %v1349
    %1498 = vmatprep.subr.mxu0 %v1352
    %1499 = vmatpush1.msra.mxu0 %v1351
    %1500 = vmatprep.subr.mxu0 %v1354
    %1501 = vmatpush1.msra.mxu0 %v1353
    %1502 = vmatprep.subr.mxu0 %v1356
    %1503 = vmatpush1.msra.mxu0 %v1355
    %1504 = vmatprep.subr.mxu0 %v1358
    %1505 = vmatpush1.msra.mxu0 %v1357
    %1506 = vmatprep.subr.mxu0 %v1360
    %1507 = vmatpush1.msra.mxu0 %v1359
    %1508 = vmatprep.subr.mxu0 %v1362
    %1509 = vmatpush1.msra.mxu0 %v1361
    %1510 = vmatprep.subr.mxu0 %v1364
    %1511 = vmatpush1.msra.mxu0 %v1363
    %1512 = vmatprep.subr.mxu0 %v1366
    %1513 = vmatpush1.msra.mxu0 %v1365
    %1514 = vmatprep.subr.mxu0 %v1368
    %1515 = vmatpush1.msra.mxu0 %v1367
    %1516 = vmatprep.subr.mxu0 %v1370
    %1517 = vmatpush1.msra.mxu0 %v1369
    %1518 = vmatprep.subr.mxu0 %v1372
    %1519 = vmatpush1.msra.mxu0 %v1371
    %1520 = vmatprep.subr.mxu0 %v1374
    %1521 = vmatpush1.msra.mxu0 %v1373
    %1522 = vmatprep.subr.mxu0 %v1376
    %1523 = vmatpush1.msra.mxu0 %v1375
    %1524 = vmatprep.subr.mxu0 %v1378
    %1525 = vmatpush1.msra.mxu0 %v1377
    %1526 = vmatprep.subr.mxu0 %v1380
    %1527 = vmatpush1.msra.mxu0 %v1379
    %1528 = vmatprep.subr.mxu0 %v1382
    %1529 = vmatpush1.msra.mxu0 %v1381
    %1530 = vmatprep.subr.mxu0 %v1384
    %1531 = vmatpush1.msra.mxu0 %v1383
    %1532 = vmatprep.subr.mxu0 %v1386
    %1533 = vmatpush1.msra.mxu0 %v1385
    %1534 = vmatprep.mubr.f32.mxu0 %v1258
    %1535 = vmatmul.mubr.f32.gmra.mrb[0].mxu0 %v1257
    %v1536 = vpop.f32.mrb[0].mxu0
    %v1537 = vadd.f32 %v1466, %v1536
    %v1538 = vpop.f32.mrb[0].mxu0
    %v1539 = vadd.f32 %v1468, %v1538
    %1540 = vdwg.mxu0
    %v1541 = vmax.f32 %v1537, 0.0
    %v1542 = vmax.f32 %v1539, 0.0
    %v1543 = vld [vmem:[%s5] sm:$0xff]
    %v1544 = vld [vmem:[%s5 + $0x8] sm:$0xff]
    %v1545 = vld [vmem:[%s5 + $0x10] sm:$0xff]
    %v1546 = vld [vmem:[%s5 + $0x18] sm:$0xff]
    %v1547 = vld [vmem:[%s5 + $0x20] sm:$0xff]
    %v1548 = vld [vmem:[%s5 + $0x28] sm:$0xff]
    %v1549 = vld [vmem:[%s5 + $0x30] sm:$0xff]
    %v1550 = vld [vmem:[%s5 + $0x38] sm:$0xff]
    %v1551 = vld [vmem:[%s5 + $0x40] sm:$0xff]
    %v1552 = vld [vmem:[%s5 + $0x48] sm:$0xff]
    %v1553 = vld [vmem:[%s5 + $0x50] sm:$0xff]
    %v1554 = vld [vmem:[%s5 + $0x58] sm:$0xff]
    %v1555 = vld [vmem:[%s5 + $0x60] sm:$0xff]
    %v1556 = vld [vmem:[%s5 + $0x68] sm:$0xff]
    %v1557 = vld [vmem:[%s5 + $0x70] sm:$0xff]
    %v1558 = vld [vmem:[%s5 + $0x78] sm:$0xff]
    %v1559 = vld [vmem:[%s5 + $0x80] sm:$0xff]
    %v1560 = vld [vmem:[%s5 + $0x88] sm:$0xff]
    %v1561 = vld [vmem:[%s5 + $0x90] sm:$0xff]
    %v1562 = vld [vmem:[%s5 + $0x98] sm:$0xff]
    %v1563 = vld [vmem:[%s5 + $0xa0] sm:$0xff]
    %v1564 = vld [vmem:[%s5 + $0xa8] sm:$0xff]
    %v1565 = vld [vmem:[%s5 + $0xb0] sm:$0xff]
    %v1566 = vld [vmem:[%s5 + $0xb8] sm:$0xff]
    %v1567 = vld [vmem:[%s5 + $0xc0] sm:$0xff]
    %v1568 = vld [vmem:[%s5 + $0xc8] sm:$0xff]
    %v1569 = vld [vmem:[%s5 + $0xd0] sm:$0xff]
    %v1570 = vld [vmem:[%s5 + $0xd8] sm:$0xff]
    %v1571 = vld [vmem:[%s5 + $0xe0] sm:$0xff]
    %v1572 = vld [vmem:[%s5 + $0xe8] sm:$0xff]
    %v1573 = vld [vmem:[%s5 + $0xf0] sm:$0xff]
    %v1574 = vld [vmem:[%s5 + $0xf8] sm:$0xff]
    %v1575 = vld [vmem:[#allocation10] sm:$0x1]
    %v1577 = vlaneseq
    %v1578 = vshrl.u32 %v1577, 7
    %v1579 = vsub.s32 0, %v1578
    %v1580 = vrot.slane %v1575, %v1579
    %1582 = vmatprep.subr.mxu0 0.0
    %1583 = vmatpush1.msra.mxu0 %v1543
    %1584 = vmatprep.subr.mxu0 0.0
    %1585 = vmatpush1.msra.mxu0 %v1544
    %1586 = vmatprep.subr.mxu0 0.0
    %1587 = vmatpush1.msra.mxu0 %v1545
    %1588 = vmatprep.subr.mxu0 0.0
    %1589 = vmatpush1.msra.mxu0 %v1546
    %1590 = vmatprep.subr.mxu0 0.0
    %1591 = vmatpush1.msra.mxu0 %v1547
    %1592 = vmatprep.subr.mxu0 0.0
    %1593 = vmatpush1.msra.mxu0 %v1548
    %1594 = vmatprep.subr.mxu0 0.0
    %1595 = vmatpush1.msra.mxu0 %v1549
    %1596 = vmatprep.subr.mxu0 0.0
    %1597 = vmatpush1.msra.mxu0 %v1550
    %1598 = vmatprep.subr.mxu0 0.0
    %1599 = vmatpush1.msra.mxu0 %v1551
    %1600 = vmatprep.subr.mxu0 0.0
    %1601 = vmatpush1.msra.mxu0 %v1552
    %1602 = vmatprep.subr.mxu0 0.0
    %1603 = vmatpush1.msra.mxu0 %v1553
    %1604 = vmatprep.subr.mxu0 0.0
    %1605 = vmatpush1.msra.mxu0 %v1554
    %1606 = vmatprep.subr.mxu0 0.0
    %1607 = vmatpush1.msra.mxu0 %v1555
    %1608 = vmatprep.subr.mxu0 0.0
    %1609 = vmatpush1.msra.mxu0 %v1556
    %1610 = vmatprep.subr.mxu0 0.0
    %1611 = vmatpush1.msra.mxu0 %v1557
    %1612 = vmatprep.subr.mxu0 0.0
    %1613 = vmatpush1.msra.mxu0 %v1558
    %1614 = vmatprep.subr.mxu0 0.0
    %1615 = vmatpush1.msra.mxu0 %v1559
    %1616 = vmatprep.subr.mxu0 0.0
    %1617 = vmatpush1.msra.mxu0 %v1560
    %1618 = vmatprep.subr.mxu0 0.0
    %1619 = vmatpush1.msra.mxu0 %v1561
    %1620 = vmatprep.subr.mxu0 0.0
    %1621 = vmatpush1.msra.mxu0 %v1562
    %1622 = vmatprep.subr.mxu0 0.0
    %1623 = vmatpush1.msra.mxu0 %v1563
    %1624 = vmatprep.subr.mxu0 0.0
    %1625 = vmatpush1.msra.mxu0 %v1564
    %1626 = vmatprep.subr.mxu0 0.0
    %1627 = vmatpush1.msra.mxu0 %v1565
    %1628 = vmatprep.subr.mxu0 0.0
    %1629 = vmatpush1.msra.mxu0 %v1566
    %1630 = vmatprep.subr.mxu0 0.0
    %1631 = vmatpush1.msra.mxu0 %v1567
    %1632 = vmatprep.subr.mxu0 0.0
    %1633 = vmatpush1.msra.mxu0 %v1568
    %1634 = vmatprep.subr.mxu0 0.0
    %1635 = vmatpush1.msra.mxu0 %v1569
    %1636 = vmatprep.subr.mxu0 0.0
    %1637 = vmatpush1.msra.mxu0 %v1570
    %1638 = vmatprep.subr.mxu0 0.0
    %1639 = vmatpush1.msra.mxu0 %v1571
    %1640 = vmatprep.subr.mxu0 0.0
    %1641 = vmatpush1.msra.mxu0 %v1572
    %1642 = vmatprep.subr.mxu0 0.0
    %1643 = vmatpush1.msra.mxu0 %v1573
    %1644 = vmatprep.subr.mxu0 0.0
    %1645 = vmatpush1.msra.mxu0 %v1574
    %1646 = vmatprep.mubr.f32.mxu0 %v1542
    %1647 = vmatmul.mubr.f32.gmra.mrb[0].mxu0 %v1541
    %v1648 = vpop.f32.mrb[0].mxu0
    %v1649 = vadd.f32 %v1580, %v1648
    %v1650 = vpop.f32.mrb[0].mxu0
    %1651 = vdwg.mxu0
    %v1652 = vmax.f32 %v1649, 0.0
    %v1653 = vld [vmem:[%s7] sm:$0xff]
    %v1654 = vld [vmem:[%s7 + $0x8] sm:$0xff]
    %v1655 = vld [vmem:[%s7 + $0x10] sm:$0xff]
    %v1656 = vld [vmem:[%s7 + $0x18] sm:$0xff]
    %v1657 = vld [vmem:[#allocation11] sm:$0x1]
    %v1659 = vlaneseq
    %v1660 = vshrl.u32 %v1659, 7
    %v1661 = vsub.s32 0, %v1660
    %v1662 = vrot.slane %v1657, %v1661
    %vm1664 = vcmask 261120
    %v1666 = vsel %vm1664, %v1652, 0
    %1668 = vmatprep.subr.mxu0 0.0
    %1669 = vmatpush1.msra.mxu0 %v1653
    %1670 = vmatprep.subr.mxu0 0.0
    %1671 = vmatpush1.msra.mxu0 %v1654
    %1672 = vmatprep.subr.mxu0 0.0
    %1673 = vmatpush1.msra.mxu0 %v1655
    %1674 = vmatprep.subr.mxu0 0.0
    %1675 = vmatpush1.msra.mxu0 %v1656
    %1676 = vmatprep.subr.mxu0 0.0
    %1677 = vmatpush1.msra.mxu0 0.0
    %1678 = vmatprep.subr.mxu0 0.0
    %1679 = vmatpush1.msra.mxu0 0.0
    %1680 = vmatprep.subr.mxu0 0.0
    %1681 = vmatpush1.msra.mxu0 0.0
    %1682 = vmatprep.subr.mxu0 0.0
    %1683 = vmatpush1.msra.mxu0 0.0
    %1684 = vmatprep.subr.mxu0 0.0
    %1685 = vmatpush1.msra.mxu0 0.0
    %1686 = vmatprep.subr.mxu0 0.0
    %1687 = vmatpush1.msra.mxu0 0.0
    %1688 = vmatprep.subr.mxu0 0.0
    %1689 = vmatpush1.msra.mxu0 0.0
    %1690 = vmatprep.subr.mxu0 0.0
    %1691 = vmatpush1.msra.mxu0 0.0
    %1692 = vmatprep.subr.mxu0 0.0
    %1693 = vmatpush1.msra.mxu0 0.0
    %1694 = vmatprep.subr.mxu0 0.0
    %1695 = vmatpush1.msra.mxu0 0.0
    %1696 = vmatprep.subr.mxu0 0.0
    %1697 = vmatpush1.msra.mxu0 0.0
    %1698 = vmatprep.subr.mxu0 0.0
    %1699 = vmatpush1.msra.mxu0 0.0
    %1700 = vmatprep.subr.mxu0 0.0
    %1701 = vmatpush1.msra.mxu0 0.0
    %1702 = vmatprep.subr.mxu0 0.0
    %1703 = vmatpush1.msra.mxu0 0.0
    %1704 = vmatprep.subr.mxu0 0.0
    %1705 = vmatpush1.msra.mxu0 0.0
    %1706 = vmatprep.subr.mxu0 0.0
    %1707 = vmatpush1.msra.mxu0 0.0
    %1708 = vmatprep.subr.mxu0 0.0
    %1709 = vmatpush1.msra.mxu0 0.0
    %1710 = vmatprep.subr.mxu0 0.0
    %1711 = vmatpush1.msra.mxu0 0.0
    %1712 = vmatprep.subr.mxu0 0.0
    %1713 = vmatpush1.msra.mxu0 0.0
    %1714 = vmatprep.subr.mxu0 0.0
    %1715 = vmatpush1.msra.mxu0 0.0
    %1716 = vmatprep.subr.mxu0 0.0
    %1717 = vmatpush1.msra.mxu0 0.0
    %1718 = vmatprep.subr.mxu0 0.0
    %1719 = vmatpush1.msra.mxu0 0.0
    %1720 = vmatprep.subr.mxu0 0.0
    %1721 = vmatpush1.msra.mxu0 0.0
    %1722 = vmatprep.subr.mxu0 0.0
    %1723 = vmatpush1.msra.mxu0 0.0
    %1724 = vmatprep.subr.mxu0 0.0
    %1725 = vmatpush1.msra.mxu0 0.0
    %1726 = vmatprep.subr.mxu0 0.0
    %1727 = vmatpush1.msra.mxu0 0.0
    %1728 = vmatprep.subr.mxu0 0.0
    %1729 = vmatpush1.msra.mxu0 0.0
    %1730 = vmatprep.subr.mxu0 0.0
    %1731 = vmatpush1.msra.mxu0 0.0
    %1732 = vmatprep.mubr.f32.mxu0 0.0
    %1733 = vmatmul.mubr.f32.gmra.mrb[0].mxu0 %v1666
    %v1734 = vpop.f32.mrb[0].mxu0
    %v1735 = vadd.f32 %v1662, %v1734
    %v1736 = vpop.f32.mrb[0].mxu0
    %1737 = vdwg.mxu0
    %vm1738 = vcmask 58368
    %1739 = vst.msk [vmem:[#allocation13] sm:$0x3] %vm1738, %v1735
    // Predicated region
    $region62: #{encoder_forward.1} parent=1 // pred_check
      _
    $region63: #{encoder_forward.1} parent=1 // pred_check_branch
      %1741 = sbr.rel (0) target = $region65
    $region64: #{encoder_forward.1} parent=1 // pred_region
      %s1743 = ssub.s32 32, 32
      %1744 = vsyncadd [#allocation4], %s1743
      %s1746 = sshll.u32 [#allocation13], 4
      %s1747 = int_to_ptr.vmem [resolvable:$true] %s1746
      %1749 = dma.vmem_to_hbm [thread:$0]  %s1747, 32, %s9, [#allocation4]
    $region65: #{encoder_forward.1} parent=1 // pred_fallthru
      _
    // Predicated region
    $region66: #{encoder_forward.1} parent=1 // pred_check
      _
    $region67: #{encoder_forward.1} parent=1 // pred_check_branch
      %1751 = sbr.rel (0) target = $region69
    $region68: #{encoder_forward.1} parent=1 // pred_region
      %1752 = dma.done [#allocation4], 32
    $region69: #{encoder_forward.1} parent=1 // pred_fallthru
      _
    %1753 = vsyncpa [#allocation3], 1
    %1754 = vsyncpa [#allocation6], 1
    %1755 = vsyncpa [#allocation9], 1
    %1756 = vsyncpa [#allocation12], 1
    %1757 = vsyncpa [#allocation4], 1

</llo_original>
